<compile_context>
chip_gen: v7x
topology: tpu7x:2x2x1
jax: 0.10.0
libtpu: 0.0.40
codegen_flags: <defaults>
</compile_context>

<pallas_src>
import functools

import jax
import jax.numpy as jnp
from jax import lax
from jax.experimental import pallas as pl
from jax.experimental.pallas import tpu as pltpu

NUM_EMBEDDINGS = 512          # K: VQ codebook size (pytorch_disco default)
EMB_DIM = 64                  # D: VQ embedding dim
TILE_N_MAX = 2048             # max voxels per grid step (lane-dense)
QUANT_DTYPE = jnp.float32     # jnp.bfloat16 halves quant HBM writeback if acceptable

# Fused per-code lookup-table row layout.
ROW_CE = 0                    # per-code cross-entropy
ROW_AMAX_HI = 1               # argmax code // 256  (value <= 1,   exact in any matmul precision)
ROW_AMAX_LO = 2               # argmax code %  256  (value <= 255, exact in any matmul precision)
ROW_QUANT = 8                 # rows 8..8+D-1: vq_codebook[argmax]^T (sublane-aligned start)
TABLE_ROWS = ROW_QUANT + EMB_DIM   # 72 (multiple of 8)


def _round_up(x, m):
    return ((x + m - 1) // m) * m


def _pick_tile_n(s):
    """Largest lane-aligned tile <= TILE_N_MAX; prefers an exact divisor of s so
    that no tail padding (and therefore no wrapper slice copy) is needed."""
    if s % 128 == 0:
        t = min(TILE_N_MAX, s)
        while s % t != 0:
            t -= 128
        return t
    return min(TILE_N_MAX, _round_up(s, 128))


# ---------------------------------------------------------------------------
# Fused kernel: one gather-by-matmul per tile.
#   gathered[r, v] = table[r, ind[v]]
# gives CE per voxel (row 0), argmax code (rows 1/2), and the quantized feature
# vector (rows 8..71) in one MXU op; the only VPU work is the one-hot build and
# the tiny (1, tile_n) CE mask/reduce.
# ---------------------------------------------------------------------------
def _gen3dvq_lookup_kernel(s_valid, ind_ref, table_ref,
                           ce_ref, ind_out_ref, quant_ref):
    # ind_ref:     (1, tile_n) int32      codebook indices (inputs == CE targets)
    # table_ref:   (TABLE_ROWS, K) f32    fused per-code lookup table
    # ce_ref:      (1, 128) f32           per-tile CE partial sum (lane 0)
    # ind_out_ref: (1, tile_n) int32      argmax codes
    # quant_ref:   (D, tile_n)            quantized features (batch dim squeezed)
    k = table_ref.shape[1]
    tile_n = ind_ref.shape[1]

    ind = ind_ref[...]                                             # (1, tile_n)
    code_iota = lax.broadcasted_iota(jnp.int32, (k, tile_n), 0)    # code on sublanes
    # NOTE: out-of-range codes (<0 or >=512) give an all-zero one-hot column:
    # CE contribution 0, argmax 0, quant 0 (torch.nn.Embedding would error).
    onehot = (ind == code_iota).astype(jnp.float32)                # (k, tile_n)

    # gathered[r, v] = table[r, ind[v]]   (gather-by-matmul on the MXU)
    gathered = jnp.dot(table_ref[...], onehot,
                       preferred_element_type=jnp.float32)         # (TABLE_ROWS, tile_n)

    # --- cross-entropy partial sum (mask tail-padded voxels) ---
    ce_row = gathered[ROW_CE:ROW_CE + 1, :]                        # (1, tile_n)
    lane = lax.broadcasted_iota(jnp.int32, (1, tile_n), 1)
    pos = pl.program_id(1) * tile_n + lane                         # position within batch row
    ce_sum = jnp.sum(jnp.where(pos < s_valid, ce_row, 0.0))

    out_lane = lax.broadcasted_iota(jnp.int32, (1, 128), 1)
    ce_ref[...] = jnp.where(out_lane == 0, ce_sum, 0.0).astype(jnp.float32)

    # --- argmax codes: hi*256 + lo, both rows exact small integers ---
    amax_hi = gathered[ROW_AMAX_HI:ROW_AMAX_HI + 1, :]
    amax_lo = gathered[ROW_AMAX_LO:ROW_AMAX_LO + 1, :]
    ind_out_ref[...] = (amax_hi * 256.0 + amax_lo + 0.5).astype(jnp.int32)

    # --- quantized features, already channel-first (D, tile_n) ---
    quant_ref[...] = gathered[ROW_QUANT:, :].astype(quant_ref.dtype)


def _gen3dvq_lookup_call(ind2d, table, batch, s_pad, tile_n, s_valid):
    """ind2d: (1, batch*s_pad) int32, table: (TABLE_ROWS, K) f32.
       Returns (ce_partials (1, batch*nt*128) f32,
                ind        (1, batch*s_pad) int32,
                quant      (batch, D, s_pad) QUANT_DTYPE)."""
    num_tiles = s_pad // tile_n
    k = table.shape[1]

    kernel = functools.partial(_gen3dvq_lookup_kernel, s_valid)
    return pl.pallas_call(
        kernel,
        out_shape=(
            jax.ShapeDtypeStruct((1, batch * num_tiles * 128), jnp.float32),
            jax.ShapeDtypeStruct((1, batch * s_pad), jnp.int32),
            jax.ShapeDtypeStruct((batch, EMB_DIM, s_pad), QUANT_DTYPE),
        ),
        grid_spec=pltpu.PrefetchScalarGridSpec(
            num_scalar_prefetch=0,
            grid=(batch, num_tiles),
            in_specs=[
                # indices, lane-dense
                pl.BlockSpec((1, tile_n), lambda b, i: (0, b * num_tiles + i)),
                # fused per-code table, grid-invariant (small: ~144 KiB)
                pl.BlockSpec((TABLE_ROWS, k), lambda b, i: (0, 0)),
            ],
            out_specs=[
                pl.BlockSpec((1, 128), lambda b, i: (0, b * num_tiles + i)),
                pl.BlockSpec((1, tile_n), lambda b, i: (0, b * num_tiles + i)),
                # quant written directly into final (B, D, ZYX) layout
                pl.BlockSpec((None, EMB_DIM, tile_n), lambda b, i: (b, 0, i)),
            ],
        ),
        compiler_params=pltpu.CompilerParams(
            dimension_semantics=("parallel", "parallel"),   # megacore / 2-TC sharding
            vmem_limit_bytes=32 * 1024 * 1024),
    )(ind2d, table)


# ---------------------------------------------------------------------------
# Model wrapper (run_train path of CarlaGen3dvqModel.forward)
# ---------------------------------------------------------------------------
def init_params(key):
    k0, k1, k2 = jax.random.split(key, 3)
    return {
        # Gen3dNet input embedding for codebook indices
        "gen3d_embed": jax.random.normal(k0, (NUM_EMBEDDINGS, EMB_DIM), jnp.float32) * 0.02,
        # Gen3dNet head (1x1x1 conv == matmul) to 512-way logits
        "gen3d_w": jax.random.normal(k1, (EMB_DIM, NUM_EMBEDDINGS), jnp.float32) * 0.02,
        "gen3d_b": jnp.zeros((NUM_EMBEDDINGS,), jnp.float32),
        # Vq3dNet codebook (convert_inds_to_embeds)
        "vq_codebook": jax.random.normal(k2, (NUM_EMBEDDINGS, EMB_DIM), jnp.float32) * 0.02,
    }


@jax.jit
def carla_gen3dvq_train_forward(ind_memR, params):
    """ind_memR: (B, Z2, Y2, X2) int32 codebook indices (feed['ind_memR']).
       Returns (total_loss scalar f32, ind_vox (B,Z2,Y2,X2) int32,
                quant_vox (B, EMB_DIM, Z2, Y2, X2) [NCDHW like PyTorch]).
       CE is mean over all voxels (F.cross_entropy reduction='mean'); any
       hyp.gen3d_coeff lives inside Gen3dNet and is not modeled here."""
    B, Z, Y, X = ind_memR.shape
    s = Z * Y * X
    n = B * s
    tile_n = _pick_tile_n(s)
    s_pad = _round_up(s, tile_n)

    ind_bs = ind_memR.reshape(B, s).astype(jnp.int32)
    if s_pad != s:
        ind_bs = jnp.pad(ind_bs, ((0, 0), (0, s_pad - s)))   # pad code 0, masked in CE
    ind2d = ind_bs.reshape(1, B * s_pad)

    # ---- per-code tables (tiny O(K^2) precompute; all per-voxel quantities are
    #      pure functions of the input code for the 1x1x1-conv stand-in head) ----
    ewb = (jnp.dot(params["gen3d_embed"], params["gen3d_w"],
                   preferred_element_type=jnp.float32)
           + params["gen3d_b"][None, :])                       # (K, K): logits per input code
    m = jnp.max(ewb, axis=1)
    lse = m + jnp.log(jnp.sum(jnp.exp(ewb - m[:, None]), axis=1))
    tgt_logit = jnp.diagonal(ewb)                              # CE target for code c is c
    ce_per_code = lse - tgt_logit                              # (K,)
    amax_per_code = jnp.argmax(ewb, axis=1).astype(jnp.int32)  # ties -> first (torch-like)
    quant_per_code = params["vq_codebook"][amax_per_code]      # (K, D)

    table = jnp.zeros((TABLE_ROWS, NUM_EMBEDDINGS), jnp.float32)
    table = table.at[ROW_CE].set(ce_per_code)
    table = table.at[ROW_AMAX_HI].set((amax_per_code // 256).astype(jnp.float32))
    table = table.at[ROW_AMAX_LO].set((amax_per_code % 256).astype(jnp.float32))
    table = table.at[ROW_QUANT:].set(quant_per_code.T)

    ce_partials, ind_out, quant = _gen3dvq_lookup_call(
        ind2d, table, B, s_pad, tile_n, s)

    gen3d_loss = jnp.sum(ce_partials) / jnp.float32(n)
    total_loss = jnp.float32(0.0) + gen3d_loss

    ind_vox = ind_out.reshape(B, s_pad)[:, :s].reshape(B, Z, Y, X)
    # quant already comes out NCDHW-ordered: (B, D, ZYX) -> reshape only (no transpose)
    quant_vox = quant[:, :, :s].reshape(B, EMB_DIM, Z, Y, X)

    return total_loss, ind_vox, quant_vox


if __name__ == "__main__":
    key = jax.random.PRNGKey(0)
    kp, ki = jax.random.split(key)
    params = init_params(kp)

    # small shapes: B=2, half-resolution voxel grid Z2=Y2=X2=8  (N = 1024 voxels)
    B, Z2, Y2, X2 = 2, 8, 8, 8
    ind_memR = jax.random.randint(ki, (B, Z2, Y2, X2), 0, NUM_EMBEDDINGS, jnp.int32)

    total_loss, ind_vox, quant_vox = carla_gen3dvq_train_forward(ind_memR, params)
    jax.block_until_ready((total_loss, ind_vox, quant_vox))

    assert total_loss.shape == ()
    assert ind_vox.shape == (B, Z2, Y2, X2)
    assert quant_vox.shape == (B, EMB_DIM, Z2, Y2, X2)
    assert bool(jnp.isfinite(total_loss))

    # pure-JAX f32 reference parity check
    ewb = jnp.dot(params["gen3d_embed"], params["gen3d_w"],
                  preferred_element_type=jnp.float32) + params["gen3d_b"][None, :]
    ind_flat = ind_memR.reshape(-1)
    logits = ewb[ind_flat]                                        # (N, K)
    ce_ref = (jax.nn.logsumexp(logits, axis=1)
              - jnp.take_along_axis(logits, ind_flat[:, None], axis=1)[:, 0])
    loss_ref = jnp.mean(ce_ref)
    ind_ref = jnp.argmax(logits, axis=1).astype(jnp.int32).reshape(B, Z2, Y2, X2)
    quant_ref = params["vq_codebook"][ind_ref].transpose(0, 4, 1, 2, 3)

    assert bool(jnp.array_equal(ind_vox, ind_ref))
    assert bool(jnp.allclose(quant_vox.astype(jnp.float32), quant_ref,
                             rtol=1e-2, atol=1e-3))
    assert bool(jnp.allclose(total_loss, loss_ref, rtol=1e-2, atol=5e-2))
    print("KERNEL_OK")
</pallas_src>

<mosaic_0001>
module attributes {stable_mosaic.version = 11 : i64} {
  func.func @_gen3dvq_lookup_kernel(%arg0: i32, %arg1: i32, %arg2: memref<1x512xi32, #tpu.memory_space<vmem>>, %arg3: memref<72x512xf32, #tpu.memory_space<vmem>>, %arg4: memref<1x128xf32, #tpu.memory_space<vmem>>, %arg5: memref<1x512xi32, #tpu.memory_space<vmem>>, %arg6: memref<1x64x512xf32, #tpu.memory_space<vmem>>) attributes {dimension_semantics = [#tpu.dimension_semantics<parallel>, #tpu.dimension_semantics<parallel>], iteration_bounds = array<i64: 2, 1>, scalar_prefetch = 0 : i64, scratch_operands = 0 : i64, tpu.core_type = #tpu.core_type<tc>, window_params = [{transform_indices = @transform_0, window_bounds = array<i64: 1, 512>}, {pipeline_mode = #tpu.pipeline_mode<synchronous>, transform_indices = @transform_1, window_bounds = array<i64: 72, 512>}, {transform_indices = @transform_2, window_bounds = array<i64: 1, 128>}, {transform_indices = @transform_3, window_bounds = array<i64: 1, 512>}, {transform_indices = @transform_4, window_bounds = array<i64: 1, 64, 512>}]} {
    %c0 = arith.constant 0 : index
    %c0_0 = arith.constant 0 : index
    %0 = vector.load %arg2[%c0, %c0_0] : memref<1x512xi32, #tpu.memory_space<vmem>>, vector<1x512xi32>
    %1 = tpu.iota {dimensions = array<i32: 0>} : vector<512x512xi32>
    %2 = vector.broadcast %0 : vector<1x512xi32> to vector<512x512xi32>
    %3 = arith.cmpi eq, %2, %1 : vector<512x512xi32>
    %4 = arith.extui %3 : vector<512x512xi1> to vector<512x512xi32>
    %5 = arith.sitofp %4 : vector<512x512xi32> to vector<512x512xf32>
    %c0_1 = arith.constant 0 : index
    %c0_2 = arith.constant 0 : index
    %6 = vector.load %arg3[%c0_1, %c0_2] : memref<72x512xf32, #tpu.memory_space<vmem>>, vector<72x512xf32>
    %cst = arith.constant dense<0.000000e+00> : vector<72x512xf32>
    %7 = tpu.matmul %6, %5, %cst {dimension_numbers = #tpu.dot_dimension_numbers<[1], [0], [0], [1], [0, 0, 1, 1], [], []>} : vector<72x512xf32>, vector<512x512xf32>, vector<72x512xf32> -> vector<72x512xf32>
    %8 = vector.extract_strided_slice %7 {offsets = [0, 0], sizes = [1, 512], strides = [1, 1]} : vector<72x512xf32> to vector<1x512xf32>
    %9 = tpu.iota {dimensions = array<i32: 1>} : vector<1x512xi32>
    %c512_i32 = arith.constant 512 : i32
    %10 = arith.muli %arg1, %c512_i32 : i32
    %11 = vector.broadcast %10 : i32 to vector<1x512xi32>
    %12 = arith.addi %11, %9 : vector<1x512xi32>
    %c512_i32_3 = arith.constant 512 : i32
    %13 = vector.broadcast %c512_i32_3 : i32 to vector<1x512xi32>
    %14 = arith.cmpi slt, %12, %13 : vector<1x512xi32>
    %cst_4 = arith.constant 0.000000e+00 : f32
    %15 = vector.broadcast %cst_4 : f32 to vector<1x512xf32>
    %16 = arith.select %14, %8, %15 : vector<1x512xi1>, vector<1x512xf32>
    %17 = vector.shape_cast %16 : vector<1x512xf32> to vector<1x1x512xf32>
    %cst_5 = arith.constant dense<0.000000e+00> : vector<1xf32>
    %18 = vector.multi_reduction <add>, %17, %cst_5 [1, 2] : vector<1x1x512xf32> to vector<1xf32>
    %19 = vector.shape_cast %18 : vector<1xf32> to vector<1x1x1xf32>
    %20 = vector.extract %19[0, 0, 0] : f32 from vector<1x1x1xf32>
    %21 = tpu.iota {dimensions = array<i32: 1>} : vector<1x128xi32>
    %c0_i32 = arith.constant 0 : i32
    %22 = vector.broadcast %c0_i32 : i32 to vector<1x128xi32>
    %23 = arith.cmpi eq, %21, %22 : vector<1x128xi32>
    %cst_6 = arith.constant 0.000000e+00 : f32
    %24 = vector.broadcast %20 : f32 to vector<1x128xf32>
    %25 = vector.broadcast %cst_6 : f32 to vector<1x128xf32>
    %26 = arith.select %23, %24, %25 : vector<1x128xi1>, vector<1x128xf32>
    %c0_7 = arith.constant 0 : index
    %c0_8 = arith.constant 0 : index
    %27 = vector.load %arg4[%c0_7, %c0_8] : memref<1x128xf32, #tpu.memory_space<vmem>>, vector<1x128xf32>
    tpu.vector_store %arg4[%c0_7, %c0_8], %26 {strides = array<i32>} : memref<1x128xf32, #tpu.memory_space<vmem>>, vector<1x128xf32>,
    %28 = vector.extract_strided_slice %7 {offsets = [1, 0], sizes = [1, 512], strides = [1, 1]} : vector<72x512xf32> to vector<1x512xf32>
    %29 = vector.extract_strided_slice %7 {offsets = [2, 0], sizes = [1, 512], strides = [1, 1]} : vector<72x512xf32> to vector<1x512xf32>
    %cst_9 = arith.constant 2.560000e+02 : f32
    %30 = vector.broadcast %cst_9 : f32 to vector<1x512xf32>
    %31 = arith.mulf %28, %30 : vector<1x512xf32>
    %32 = arith.addf %31, %29 : vector<1x512xf32>
    %cst_10 = arith.constant 5.000000e-01 : f32
    %33 = vector.broadcast %cst_10 : f32 to vector<1x512xf32>
    %34 = arith.addf %32, %33 : vector<1x512xf32>
    %35 = arith.fptosi %34 : vector<1x512xf32> to vector<1x512xi32>
    %c0_11 = arith.constant 0 : index
    %c0_12 = arith.constant 0 : index
    %36 = vector.load %arg5[%c0_11, %c0_12] : memref<1x512xi32, #tpu.memory_space<vmem>>, vector<1x512xi32>
    tpu.vector_store %arg5[%c0_11, %c0_12], %35 {strides = array<i32>} : memref<1x512xi32, #tpu.memory_space<vmem>>, vector<1x512xi32>,
    %37 = vector.extract_strided_slice %7 {offsets = [8, 0], sizes = [64, 512], strides = [1, 1]} : vector<72x512xf32> to vector<64x512xf32>
    %c0_13 = arith.constant 0 : index
    %c0_14 = arith.constant 0 : index
    %c0_15 = arith.constant 0 : index
    %38 = vector.load %arg6[%c0_13, %c0_14, %c0_15] : memref<1x64x512xf32, #tpu.memory_space<vmem>>, vector<1x64x512xf32>
    %39 = vector.shape_cast %38 : vector<1x64x512xf32> to vector<64x512xf32>
    %40 = vector.shape_cast %37 : vector<64x512xf32> to vector<1x64x512xf32>
    tpu.vector_store %arg6[%c0_13, %c0_14, %c0_15], %40 {strides = array<i32>} : memref<1x64x512xf32, #tpu.memory_space<vmem>>, vector<1x64x512xf32>,
    return
  }
  func.func @transform_0(%arg0: i32, %arg1: i32) -> (i32, i32) {
    %c1_i32 = arith.constant 1 : i32
    %0 = arith.muli %arg0, %c1_i32 : i32
    %1 = arith.addi %0, %arg1 : i32
    %c0_i32 = arith.constant 0 : i32
    %c0_i32_0 = arith.constant 0 : i32
    return %c0_i32, %1 : i32, i32
  }
  func.func @transform_1(%arg0: i32, %arg1: i32) -> (i32, i32) {
    %c0_i32 = arith.constant 0 : i32
    %c0_i32_0 = arith.constant 0 : i32
    %c0_i32_1 = arith.constant 0 : i32
    return %c0_i32, %c0_i32_0 : i32, i32
  }
  func.func @transform_2(%arg0: i32, %arg1: i32) -> (i32, i32) {
    %c1_i32 = arith.constant 1 : i32
    %0 = arith.muli %arg0, %c1_i32 : i32
    %1 = arith.addi %0, %arg1 : i32
    %c0_i32 = arith.constant 0 : i32
    %c0_i32_0 = arith.constant 0 : i32
    return %c0_i32, %1 : i32, i32
  }
  func.func @transform_3(%arg0: i32, %arg1: i32) -> (i32, i32) {
    %c1_i32 = arith.constant 1 : i32
    %0 = arith.muli %arg0, %c1_i32 : i32
    %1 = arith.addi %0, %arg1 : i32
    %c0_i32 = arith.constant 0 : i32
    %c0_i32_0 = arith.constant 0 : i32
    return %c0_i32, %1 : i32, i32
  }
  func.func @transform_4(%arg0: i32, %arg1: i32) -> (i32, i32, i32) {
    %c0_i32 = arith.constant 0 : i32
    %c0_i32_0 = arith.constant 0 : i32
    return %arg0, %c0_i32, %arg1 : i32, i32, i32
  }
}

</mosaic_0001>

<llo_original>
// kernel: carla_gen3dvq_train_forward.1
$region0: #{carla_gen3dvq_train_forward.1}
  #allocation0 [shape = 'u32[]', space=smem, size = 0x4, offset = 0x4, fixed_abs, tag = 'smem constant byte address 0x4 - core index']
  #allocation1 [shape = 'u32[144,128]{1,0:T(1,128)}', space=vmem, size = 0x12000, scoped, tag = 'internal scratch']
  %s0 = inlined_call_operand.vmem [shape: s32[1,1024], index: 0, kind: input, shape index: {}]
  %s1 = inlined_call_operand.vmem [shape: f32[72,512], index: 1, kind: input, shape index: {}]
  %s2 = inlined_call_operand.vmem [shape: f32[1,256], index: 2, kind: output, shape index: {0}]
  %s3 = inlined_call_operand.vmem [shape: s32[1,1024], index: 3, kind: output, shape index: {1}]
  %s4 = inlined_call_operand.vmem [shape: f32[2,64,512], index: 4, kind: output, shape index: {2}]
  %5 = xla_tuple %s2, %s3, %s4
  %s6 = sld [smem:[#allocation0]]
  $region57: #{carla_gen3dvq_train_forward.1} parent=0
    _
  %s8 = ssub.s32 1, %s6
  %s9 = scalar_select 0, %s8, %s6
  loop: start=0, step=1, limit=4
  $region2: #{carla_gen3dvq_train_forward.1} parent=0 // loop_pre_header
    _
  $region3: #{carla_gen3dvq_train_forward.1} parent=0 // loop_header
    %s11 = sphi 0, %s15
    %p12 = scmp.ge.s32.totalorder %s11, 4
    %s18 = sphi 0, %s30
    %s19 = sphi 0, %s26
    %s20 = sphi 0, %s18
    %s21 = sphi 0, %s19
    %s22 = sphi 0, %s20
    %s23 = sphi 0, %s21
    %s35 = sphi 0, %s37
    %s38 = sphi 0, %s35
    %s39 = sphi 0, %s38
    %s55 = sphi 0, %s39
    %s59 = sphi 0, %s59
    %s61 = sphi 0, %s59
    %s62 = sphi 0, %s61
    %s76 = sphi 0, %s62
    %s84 = sphi 0, %s86
    %s87 = sphi 0, %s84
    %s88 = sphi 0, %s87
    %s104 = sphi 0, %s88
    %s112 = sphi 0, %s114
    %s115 = sphi 0, %s112
    %s116 = sphi 0, %s115
    %s132 = sphi 0, %s116
    %s140 = sphi 0, %s142
    %s143 = sphi 0, %s140
    %s144 = sphi 0, %s143
    %s160 = sphi 0, %s144
  $region4: #{carla_gen3dvq_train_forward.1} parent=0 // loop_header_branch
    %14 = sbr.rel (%p12) target = $region8
  $region5: #{carla_gen3dvq_train_forward.1} parent=0 // loop_body
    %s16 = ssub.s32 %s11, 1
    %s17 = ssub.s32 %s11, 2
    %s24 = sadd.s32 1, %s19
    %p25 = scmp.ge.s32.totalorder %s24, 1
    %s26 = scalar_select %p25, 0, %s24
    %s27 = sadd.s32 1, %s18
    %s28 = scalar_select %p25, %s27, %s18
    %p29 = scmp.ge.s32.totalorder %s28, 2
    %s30 = scalar_select %p29, 0, %s28
    %s31 = sadd.s32 %s18, %s19
    %s32 = sadd.s32 %s30, %s26
    %s33 = ssub.s32 %s31, %s32
    %p34 = scmp.eq.s32.totalorder %s33, 0
    %s36 = sadd.s32 %s35, 1
    %s37 = scalar_select %p34, %s35, %s36
    %p40 = pneg %p34
    %p41 = scmp.eq.s32.totalorder %s11, 1
    %p42 = por %p40, %p41
    %p43 = scmp.ne.s32.totalorder %s35, %s38
    %p44 = scmp.eq.s32.totalorder %s11, 0
    %p45 = por %p43, %p44
    %p46 = scmp.ne.s32.totalorder %s35, %s38
    %p47 = scmp.eq.s32.totalorder %s16, 1
    %p48 = por %p46, %p47
    %p49 = scmp.ne.s32.totalorder %s38, %s39
    %p50 = scmp.eq.s32.totalorder %s16, 0
    %p51 = por %p49, %p50
    %p52 = scmp.ne.s32.totalorder %s38, %s39
    %p53 = scmp.eq.s32.totalorder %s17, 1
    %p54 = por %p52, %p53
    %p56 = scmp.ne.s32.totalorder %s39, %s55
    %p57 = scmp.eq.s32.totalorder %s17, 0
    %p58 = por %p56, %p57
    %s60 = sadd.s32 %s59, 1
    %p63 = scmp.eq.s32.totalorder %s11, 1
    %p64 = scmp.ne.s32.totalorder %s59, %s61
    %p65 = scmp.eq.s32.totalorder %s11, 0
    %p66 = por %p64, %p65
    %p67 = scmp.ne.s32.totalorder %s59, %s61
    %p68 = scmp.eq.s32.totalorder %s16, 1
    %p69 = por %p67, %p68
    %p70 = scmp.ne.s32.totalorder %s61, %s62
    %p71 = scmp.eq.s32.totalorder %s16, 0
    %p72 = por %p70, %p71
    %p73 = scmp.ne.s32.totalorder %s61, %s62
    %p74 = scmp.eq.s32.totalorder %s17, 1
    %p75 = por %p73, %p74
    %p77 = scmp.ne.s32.totalorder %s62, %s76
    %p78 = scmp.eq.s32.totalorder %s17, 0
    %p79 = por %p77, %p78
    %s80 = sadd.s32 %s18, %s19
    %s81 = sadd.s32 %s30, %s26
    %s82 = ssub.s32 %s80, %s81
    %p83 = scmp.eq.s32.totalorder %s82, 0
    %s85 = sadd.s32 %s84, 1
    %s86 = scalar_select %p83, %s84, %s85
    %p89 = pneg %p83
    %p90 = scmp.eq.s32.totalorder %s11, 1
    %p91 = por %p89, %p90
    %p92 = scmp.ne.s32.totalorder %s84, %s87
    %p93 = scmp.eq.s32.totalorder %s11, 0
    %p94 = por %p92, %p93
    %p95 = scmp.ne.s32.totalorder %s84, %s87
    %p96 = scmp.eq.s32.totalorder %s16, 1
    %p97 = por %p95, %p96
    %p98 = scmp.ne.s32.totalorder %s87, %s88
    %p99 = scmp.eq.s32.totalorder %s16, 0
    %p100 = por %p98, %p99
    %p101 = scmp.ne.s32.totalorder %s87, %s88
    %p102 = scmp.eq.s32.totalorder %s17, 1
    %p103 = por %p101, %p102
    %p105 = scmp.ne.s32.totalorder %s88, %s104
    %p106 = scmp.eq.s32.totalorder %s17, 0
    %p107 = por %p105, %p106
    %s108 = sadd.s32 %s18, %s19
    %s109 = sadd.s32 %s30, %s26
    %s110 = ssub.s32 %s108, %s109
    %p111 = scmp.eq.s32.totalorder %s110, 0
    %s113 = sadd.s32 %s112, 1
    %s114 = scalar_select %p111, %s112, %s113
    %p117 = pneg %p111
    %p118 = scmp.eq.s32.totalorder %s11, 1
    %p119 = por %p117, %p118
    %p120 = scmp.ne.s32.totalorder %s112, %s115
    %p121 = scmp.eq.s32.totalorder %s11, 0
    %p122 = por %p120, %p121
    %p123 = scmp.ne.s32.totalorder %s112, %s115
    %p124 = scmp.eq.s32.totalorder %s16, 1
    %p125 = por %p123, %p124
    %p126 = scmp.ne.s32.totalorder %s115, %s116
    %p127 = scmp.eq.s32.totalorder %s16, 0
    %p128 = por %p126, %p127
    %p129 = scmp.ne.s32.totalorder %s115, %s116
    %p130 = scmp.eq.s32.totalorder %s17, 1
    %p131 = por %p129, %p130
    %p133 = scmp.ne.s32.totalorder %s116, %s132
    %p134 = scmp.eq.s32.totalorder %s17, 0
    %p135 = por %p133, %p134
    %s136 = ssub.s32 %s18, %s30
    %s137 = ssub.s32 %s19, %s26
    %s138 = sor.u32 %s136, %s137
    %p139 = scmp.eq.s32.totalorder %s138, 0
    %s141 = sadd.s32 %s140, 1
    %s142 = scalar_select %p139, %s140, %s141
    %p145 = pneg %p139
    %p146 = scmp.eq.s32.totalorder %s11, 1
    %p147 = por %p145, %p146
    %p148 = scmp.ne.s32.totalorder %s140, %s143
    %p149 = scmp.eq.s32.totalorder %s11, 0
    %p150 = por %p148, %p149
    %p151 = scmp.ne.s32.totalorder %s140, %s143
    %p152 = scmp.eq.s32.totalorder %s16, 1
    %p153 = por %p151, %p152
    %p154 = scmp.ne.s32.totalorder %s143, %s144
    %p155 = scmp.eq.s32.totalorder %s16, 0
    %p156 = por %p154, %p155
    %p157 = scmp.ne.s32.totalorder %s143, %s144
    %p158 = scmp.eq.s32.totalorder %s17, 1
    %p159 = por %p157, %p158
    %p161 = scmp.ne.s32.totalorder %s144, %s160
    %p162 = scmp.eq.s32.totalorder %s17, 0
    %p163 = por %p161, %p162
    %p164 = scmp.le.s32.totalorder 1, %s11
    %p165 = scmp.lt.s32.totalorder %s11, 3
    %p166 = pnand %p164, %p165
    %p167 = pneg %p166
    // Predicated region
    $region9: #{carla_gen3dvq_train_forward.1} parent=5 // pred_check
      _
    $region10: #{carla_gen3dvq_train_forward.1} parent=5 // pred_check_branch
      %169 = sbr.rel (%p166) target = $region12
    $region11: #{carla_gen3dvq_train_forward.1} parent=5 // pred_region
      %s170 = ssub.s32 %s11, 1
      // Predicated region
      $region13: #{carla_gen3dvq_train_forward.1} parent=11 // pred_check
        %p171 = pneg %p72
      $region14: #{carla_gen3dvq_train_forward.1} parent=11 // pred_check_branch
        %173 = sbr.rel (%p171) target = $region16
      $region15: #{carla_gen3dvq_train_forward.1} parent=11 // pred_region
        _
      $region16: #{carla_gen3dvq_train_forward.1} parent=11 // pred_fallthru
        _
    $region12: #{carla_gen3dvq_train_forward.1} parent=5 // pred_fallthru
      _
    %p174 = scmp.lt.s32.totalorder %s11, 2
    // Predicated region
    $region17: #{carla_gen3dvq_train_forward.1} parent=5 // pred_check
      %p175 = pneg %p174
    $region18: #{carla_gen3dvq_train_forward.1} parent=5 // pred_check_branch
      %177 = sbr.rel (%p175) target = $region20
    $region19: #{carla_gen3dvq_train_forward.1} parent=5 // pred_region
      // Predicated region
      $region21: #{carla_gen3dvq_train_forward.1} parent=19 // pred_check
        %p178 = pneg %p45
      $region22: #{carla_gen3dvq_train_forward.1} parent=19 // pred_check_branch
        %180 = sbr.rel (%p178) target = $region24
      $region23: #{carla_gen3dvq_train_forward.1} parent=19 // pred_region
        %s181 = sadd.s32 %s18, %s19
        %s182 = smul.u32 4, %s181
        %p183 = scmp.lt.s32.totalorder %s182, 7
        %s184 = scalar_select %p183, %s182, 7
        %s185 = scalar_lea.vmem %s0, %s184
        %s186 = sadd.s32 %s18, %s19
        %s187 = smul.u32 4, %s186
      $region24: #{carla_gen3dvq_train_forward.1} parent=19 // pred_fallthru
        _
    $region20: #{carla_gen3dvq_train_forward.1} parent=5 // pred_fallthru
      _
    %p188 = scmp.le.s32.totalorder 1, %s11
    %p189 = scmp.lt.s32.totalorder %s11, 3
    %p190 = pnand %p188, %p189
    %p191 = pneg %p190
    // Predicated region
    $region25: #{carla_gen3dvq_train_forward.1} parent=5 // pred_check
      _
    $region26: #{carla_gen3dvq_train_forward.1} parent=5 // pred_check_branch
      %193 = sbr.rel (%p190) target = $region28
    $region27: #{carla_gen3dvq_train_forward.1} parent=5 // pred_region
      %s194 = ssub.s32 %s11, 1
      %s195 = sadd.s32 %s20, %s21
      %s196 = smul.u32 4, %s195
      %p197 = scmp.lt.s32.totalorder %s196, 7
      %s198 = scalar_select %p197, %s196, 7
      %s199 = scalar_lea.vmem %s0, %s198
      %p200 = pneg %p51
      %p201 = pneg %p48
      %p202 = pneg %p72
      %p203 = pneg %p69
      %p204 = pneg %p100
      %p205 = pneg %p97
      %s206 = sadd.s32 %s20, %s21
      %p207 = scmp.lt.s32.totalorder %s206, 1
      %s208 = scalar_select %p207, %s206, 1
      %s209 = scalar_lea.vmem %s2, %s208
      %p210 = pneg %p128
      %p211 = pneg %p125
      %s212 = sadd.s32 %s20, %s21
      %s213 = smul.u32 4, %s212
      %p214 = scmp.lt.s32.totalorder %s213, 7
      %s215 = scalar_select %p214, %s213, 7
      %s216 = scalar_lea.vmem %s3, %s215
      %p217 = pneg %p156
      %p218 = pneg %p153
      %s219 = smul.u32 4, %s21
      %p220 = scmp.lt.s32.totalorder %s20, 1
      %s221 = scalar_select %p220, %s20, 1
      %p222 = scmp.lt.s32.totalorder %s219, 3
      %s223 = scalar_select %p222, %s219, 3
      %s224 = smul.addr %s221, 32
      %s225 = sadd.s32 %s223, %s224
      %s226 = smul.addr %s225, 8
      %s227 = scalar_lea.vmem %s4, %s226
      %s228 = sadd.s32 %s20, %s21
      %s229 = smul.u32 4, %s228
      %p230 = scmp.lt.s32.totalorder %s229, 7
      %s231 = scalar_select %p230, %s229, 7
      %s232 = scalar_lea.vmem %s0, %s231
      %s233 = sadd.s32 %s20, %s21
      %s234 = smul.u32 4, %s233
      %s235 = sadd.s32 %s20, %s21
      %p236 = scmp.lt.s32.totalorder %s235, 1
      %s237 = scalar_select %p236, %s235, 1
      %s238 = scalar_lea.vmem %s2, %s237
      %s239 = sadd.s32 %s20, %s21
      %s240 = sadd.s32 %s20, %s21
      %s241 = smul.u32 4, %s240
      %p242 = scmp.lt.s32.totalorder %s241, 7
      %s243 = scalar_select %p242, %s241, 7
      %s244 = scalar_lea.vmem %s3, %s243
      %s245 = sadd.s32 %s20, %s21
      %s246 = smul.u32 4, %s245
      %s247 = smul.u32 4, %s21
      %p248 = scmp.lt.s32.totalorder %s20, 1
      %s249 = scalar_select %p248, %s20, 1
      %p250 = scmp.lt.s32.totalorder %s247, 3
      %s251 = scalar_select %p250, %s247, 3
      %s252 = smul.addr %s249, 32
      %s253 = sadd.s32 %s251, %s252
      %s254 = smul.addr %s253, 8
      %s255 = scalar_lea.vmem %s4, %s254
      %s256 = smul.u32 4, %s21
      %v257 = vld [vmem:[%s232] sm:$0xf]
      %v258 = vlaneseq
      %v259 = vshrl.u32 %v258, 7
      %v260 = vadd.s32 %v259, 8
      %v261 = vadd.s32 %v259, 16
      %v262 = vadd.s32 %v259, 24
      %v263 = vadd.s32 %v259, 32
      %v264 = vadd.s32 %v259, 40
      %v265 = vadd.s32 %v259, 48
      %v266 = vadd.s32 %v259, 56
      %v267 = vadd.s32 %v259, 64
      %v268 = vadd.s32 %v259, 72
      %v269 = vadd.s32 %v259, 80
      %v270 = vadd.s32 %v259, 88
      %v271 = vadd.s32 %v259, 96
      %v272 = vadd.s32 %v259, 104
      %v273 = vadd.s32 %v259, 112
      %v274 = vadd.s32 %v259, 120
      %v275 = vadd.s32 %v259, 128
      %v276 = vadd.s32 %v259, 136
      %v277 = vadd.s32 %v259, 144
      %v278 = vadd.s32 %v259, 152
      %v279 = vadd.s32 %v259, 160
      %v280 = vadd.s32 %v259, 168
      %v281 = vadd.s32 %v259, 176
      %v282 = vadd.s32 %v259, 184
      %v283 = vadd.s32 %v259, 192
      %v284 = vadd.s32 %v259, 200
      %v285 = vadd.s32 %v259, 208
      %v286 = vadd.s32 %v259, 216
      %v287 = vadd.s32 %v259, 224
      %v288 = vadd.s32 %v259, 232
      %v289 = vadd.s32 %v259, 240
      %v290 = vadd.s32 %v259, 248
      %v291 = vadd.s32 %v259, 256
      %v292 = vadd.s32 %v259, 264
      %v293 = vadd.s32 %v259, 272
      %v294 = vadd.s32 %v259, 280
      %v295 = vadd.s32 %v259, 288
      %v296 = vadd.s32 %v259, 296
      %v297 = vadd.s32 %v259, 304
      %v298 = vadd.s32 %v259, 312
      %v299 = vadd.s32 %v259, 320
      %v300 = vadd.s32 %v259, 328
      %v301 = vadd.s32 %v259, 336
      %v302 = vadd.s32 %v259, 344
      %v303 = vadd.s32 %v259, 352
      %v304 = vadd.s32 %v259, 360
      %v305 = vadd.s32 %v259, 368
      %v306 = vadd.s32 %v259, 376
      %v307 = vadd.s32 %v259, 384
      %v308 = vadd.s32 %v259, 392
      %v309 = vadd.s32 %v259, 400
      %v310 = vadd.s32 %v259, 408
      %v311 = vadd.s32 %v259, 416
      %v312 = vadd.s32 %v259, 424
      %v313 = vadd.s32 %v259, 432
      %v314 = vadd.s32 %v259, 440
      %v315 = vadd.s32 %v259, 448
      %v316 = vadd.s32 %v259, 456
      %v317 = vadd.s32 %v259, 464
      %v318 = vadd.s32 %v259, 472
      %v319 = vadd.s32 %v259, 480
      %v320 = vadd.s32 %v259, 488
      %v321 = vadd.s32 %v259, 496
      %v322 = vadd.s32 %v259, 504
      %v323 = vlaneseq
      %v324 = vshrl.u32 %v323, 7
      %v325 = vsub.s32 0, %v324
      %v326 = vrot.slane %v257, %v325
      %v327 = vlaneseq
      %v328 = vshrl.u32 %v327, 7
      %v329 = vsub.s32 1, %v328
      %v330 = vrot.slane %v257, %v329
      %v331 = vlaneseq
      %v332 = vshrl.u32 %v331, 7
      %v333 = vsub.s32 2, %v332
      %v334 = vrot.slane %v257, %v333
      %v335 = vlaneseq
      %v336 = vshrl.u32 %v335, 7
      %v337 = vsub.s32 3, %v336
      %v338 = vrot.slane %v257, %v337
      %vm339 = vcmp.eq.s32.totalorder %v326, %v259
      %vm340 = vcmp.eq.s32.totalorder %v330, %v259
      %vm341 = vcmp.eq.s32.totalorder %v334, %v259
      %vm342 = vcmp.eq.s32.totalorder %v338, %v259
      %vm343 = vcmp.eq.s32.totalorder %v326, %v260
      %vm344 = vcmp.eq.s32.totalorder %v330, %v260
      %vm345 = vcmp.eq.s32.totalorder %v334, %v260
      %vm346 = vcmp.eq.s32.totalorder %v338, %v260
      %vm347 = vcmp.eq.s32.totalorder %v326, %v261
      %vm348 = vcmp.eq.s32.totalorder %v330, %v261
      %vm349 = vcmp.eq.s32.totalorder %v334, %v261
      %vm350 = vcmp.eq.s32.totalorder %v338, %v261
      %vm351 = vcmp.eq.s32.totalorder %v326, %v262
      %vm352 = vcmp.eq.s32.totalorder %v330, %v262
      %vm353 = vcmp.eq.s32.totalorder %v334, %v262
      %vm354 = vcmp.eq.s32.totalorder %v338, %v262
      %vm355 = vcmp.eq.s32.totalorder %v326, %v263
      %vm356 = vcmp.eq.s32.totalorder %v330, %v263
      %vm357 = vcmp.eq.s32.totalorder %v334, %v263
      %vm358 = vcmp.eq.s32.totalorder %v338, %v263
      %vm359 = vcmp.eq.s32.totalorder %v326, %v264
      %vm360 = vcmp.eq.s32.totalorder %v330, %v264
      %vm361 = vcmp.eq.s32.totalorder %v334, %v264
      %vm362 = vcmp.eq.s32.totalorder %v338, %v264
      %vm363 = vcmp.eq.s32.totalorder %v326, %v265
      %vm364 = vcmp.eq.s32.totalorder %v330, %v265
      %vm365 = vcmp.eq.s32.totalorder %v334, %v265
      %vm366 = vcmp.eq.s32.totalorder %v338, %v265
      %vm367 = vcmp.eq.s32.totalorder %v326, %v266
      %vm368 = vcmp.eq.s32.totalorder %v330, %v266
      %vm369 = vcmp.eq.s32.totalorder %v334, %v266
      %vm370 = vcmp.eq.s32.totalorder %v338, %v266
      %vm371 = vcmp.eq.s32.totalorder %v326, %v267
      %vm372 = vcmp.eq.s32.totalorder %v330, %v267
      %vm373 = vcmp.eq.s32.totalorder %v334, %v267
      %vm374 = vcmp.eq.s32.totalorder %v338, %v267
      %vm375 = vcmp.eq.s32.totalorder %v326, %v268
      %vm376 = vcmp.eq.s32.totalorder %v330, %v268
      %vm377 = vcmp.eq.s32.totalorder %v334, %v268
      %vm378 = vcmp.eq.s32.totalorder %v338, %v268
      %vm379 = vcmp.eq.s32.totalorder %v326, %v269
      %vm380 = vcmp.eq.s32.totalorder %v330, %v269
      %vm381 = vcmp.eq.s32.totalorder %v334, %v269
      %vm382 = vcmp.eq.s32.totalorder %v338, %v269
      %vm383 = vcmp.eq.s32.totalorder %v326, %v270
      %vm384 = vcmp.eq.s32.totalorder %v330, %v270
      %vm385 = vcmp.eq.s32.totalorder %v334, %v270
      %vm386 = vcmp.eq.s32.totalorder %v338, %v270
      %vm387 = vcmp.eq.s32.totalorder %v326, %v271
      %vm388 = vcmp.eq.s32.totalorder %v330, %v271
      %vm389 = vcmp.eq.s32.totalorder %v334, %v271
      %vm390 = vcmp.eq.s32.totalorder %v338, %v271
      %vm391 = vcmp.eq.s32.totalorder %v326, %v272
      %vm392 = vcmp.eq.s32.totalorder %v330, %v272
      %vm393 = vcmp.eq.s32.totalorder %v334, %v272
      %vm394 = vcmp.eq.s32.totalorder %v338, %v272
      %vm395 = vcmp.eq.s32.totalorder %v326, %v273
      %vm396 = vcmp.eq.s32.totalorder %v330, %v273
      %vm397 = vcmp.eq.s32.totalorder %v334, %v273
      %vm398 = vcmp.eq.s32.totalorder %v338, %v273
      %vm399 = vcmp.eq.s32.totalorder %v326, %v274
      %vm400 = vcmp.eq.s32.totalorder %v330, %v274
      %vm401 = vcmp.eq.s32.totalorder %v334, %v274
      %vm402 = vcmp.eq.s32.totalorder %v338, %v274
      %vm403 = vcmp.eq.s32.totalorder %v326, %v275
      %vm404 = vcmp.eq.s32.totalorder %v330, %v275
      %vm405 = vcmp.eq.s32.totalorder %v334, %v275
      %vm406 = vcmp.eq.s32.totalorder %v338, %v275
      %vm407 = vcmp.eq.s32.totalorder %v326, %v276
      %vm408 = vcmp.eq.s32.totalorder %v330, %v276
      %vm409 = vcmp.eq.s32.totalorder %v334, %v276
      %vm410 = vcmp.eq.s32.totalorder %v338, %v276
      %vm411 = vcmp.eq.s32.totalorder %v326, %v277
      %vm412 = vcmp.eq.s32.totalorder %v330, %v277
      %vm413 = vcmp.eq.s32.totalorder %v334, %v277
      %vm414 = vcmp.eq.s32.totalorder %v338, %v277
      %vm415 = vcmp.eq.s32.totalorder %v326, %v278
      %vm416 = vcmp.eq.s32.totalorder %v330, %v278
      %vm417 = vcmp.eq.s32.totalorder %v334, %v278
      %vm418 = vcmp.eq.s32.totalorder %v338, %v278
      %vm419 = vcmp.eq.s32.totalorder %v326, %v279
      %vm420 = vcmp.eq.s32.totalorder %v330, %v279
      %vm421 = vcmp.eq.s32.totalorder %v334, %v279
      %vm422 = vcmp.eq.s32.totalorder %v338, %v279
      %vm423 = vcmp.eq.s32.totalorder %v326, %v280
      %vm424 = vcmp.eq.s32.totalorder %v330, %v280
      %vm425 = vcmp.eq.s32.totalorder %v334, %v280
      %vm426 = vcmp.eq.s32.totalorder %v338, %v280
      %vm427 = vcmp.eq.s32.totalorder %v326, %v281
      %vm428 = vcmp.eq.s32.totalorder %v330, %v281
      %vm429 = vcmp.eq.s32.totalorder %v334, %v281
      %vm430 = vcmp.eq.s32.totalorder %v338, %v281
      %vm431 = vcmp.eq.s32.totalorder %v326, %v282
      %vm432 = vcmp.eq.s32.totalorder %v330, %v282
      %vm433 = vcmp.eq.s32.totalorder %v334, %v282
      %vm434 = vcmp.eq.s32.totalorder %v338, %v282
      %vm435 = vcmp.eq.s32.totalorder %v326, %v283
      %vm436 = vcmp.eq.s32.totalorder %v330, %v283
      %vm437 = vcmp.eq.s32.totalorder %v334, %v283
      %vm438 = vcmp.eq.s32.totalorder %v338, %v283
      %vm439 = vcmp.eq.s32.totalorder %v326, %v284
      %vm440 = vcmp.eq.s32.totalorder %v330, %v284
      %vm441 = vcmp.eq.s32.totalorder %v334, %v284
      %vm442 = vcmp.eq.s32.totalorder %v338, %v284
      %vm443 = vcmp.eq.s32.totalorder %v326, %v285
      %vm444 = vcmp.eq.s32.totalorder %v330, %v285
      %vm445 = vcmp.eq.s32.totalorder %v334, %v285
      %vm446 = vcmp.eq.s32.totalorder %v338, %v285
      %vm447 = vcmp.eq.s32.totalorder %v326, %v286
      %vm448 = vcmp.eq.s32.totalorder %v330, %v286
      %vm449 = vcmp.eq.s32.totalorder %v334, %v286
      %vm450 = vcmp.eq.s32.totalorder %v338, %v286
      %vm451 = vcmp.eq.s32.totalorder %v326, %v287
      %vm452 = vcmp.eq.s32.totalorder %v330, %v287
      %vm453 = vcmp.eq.s32.totalorder %v334, %v287
      %vm454 = vcmp.eq.s32.totalorder %v338, %v287
      %vm455 = vcmp.eq.s32.totalorder %v326, %v288
      %vm456 = vcmp.eq.s32.totalorder %v330, %v288
      %vm457 = vcmp.eq.s32.totalorder %v334, %v288
      %vm458 = vcmp.eq.s32.totalorder %v338, %v288
      %vm459 = vcmp.eq.s32.totalorder %v326, %v289
      %vm460 = vcmp.eq.s32.totalorder %v330, %v289
      %vm461 = vcmp.eq.s32.totalorder %v334, %v289
      %vm462 = vcmp.eq.s32.totalorder %v338, %v289
      %vm463 = vcmp.eq.s32.totalorder %v326, %v290
      %vm464 = vcmp.eq.s32.totalorder %v330, %v290
      %vm465 = vcmp.eq.s32.totalorder %v334, %v290
      %vm466 = vcmp.eq.s32.totalorder %v338, %v290
      %vm467 = vcmp.eq.s32.totalorder %v326, %v291
      %vm468 = vcmp.eq.s32.totalorder %v330, %v291
      %vm469 = vcmp.eq.s32.totalorder %v334, %v291
      %vm470 = vcmp.eq.s32.totalorder %v338, %v291
      %vm471 = vcmp.eq.s32.totalorder %v326, %v292
      %vm472 = vcmp.eq.s32.totalorder %v330, %v292
      %vm473 = vcmp.eq.s32.totalorder %v334, %v292
      %vm474 = vcmp.eq.s32.totalorder %v338, %v292
      %vm475 = vcmp.eq.s32.totalorder %v326, %v293
      %vm476 = vcmp.eq.s32.totalorder %v330, %v293
      %vm477 = vcmp.eq.s32.totalorder %v334, %v293
      %vm478 = vcmp.eq.s32.totalorder %v338, %v293
      %vm479 = vcmp.eq.s32.totalorder %v326, %v294
      %vm480 = vcmp.eq.s32.totalorder %v330, %v294
      %vm481 = vcmp.eq.s32.totalorder %v334, %v294
      %vm482 = vcmp.eq.s32.totalorder %v338, %v294
      %vm483 = vcmp.eq.s32.totalorder %v326, %v295
      %vm484 = vcmp.eq.s32.totalorder %v330, %v295
      %vm485 = vcmp.eq.s32.totalorder %v334, %v295
      %vm486 = vcmp.eq.s32.totalorder %v338, %v295
      %vm487 = vcmp.eq.s32.totalorder %v326, %v296
      %vm488 = vcmp.eq.s32.totalorder %v330, %v296
      %vm489 = vcmp.eq.s32.totalorder %v334, %v296
      %vm490 = vcmp.eq.s32.totalorder %v338, %v296
      %vm491 = vcmp.eq.s32.totalorder %v326, %v297
      %vm492 = vcmp.eq.s32.totalorder %v330, %v297
      %vm493 = vcmp.eq.s32.totalorder %v334, %v297
      %vm494 = vcmp.eq.s32.totalorder %v338, %v297
      %vm495 = vcmp.eq.s32.totalorder %v326, %v298
      %vm496 = vcmp.eq.s32.totalorder %v330, %v298
      %vm497 = vcmp.eq.s32.totalorder %v334, %v298
      %vm498 = vcmp.eq.s32.totalorder %v338, %v298
      %vm499 = vcmp.eq.s32.totalorder %v326, %v299
      %vm500 = vcmp.eq.s32.totalorder %v330, %v299
      %vm501 = vcmp.eq.s32.totalorder %v334, %v299
      %vm502 = vcmp.eq.s32.totalorder %v338, %v299
      %vm503 = vcmp.eq.s32.totalorder %v326, %v300
      %vm504 = vcmp.eq.s32.totalorder %v330, %v300
      %vm505 = vcmp.eq.s32.totalorder %v334, %v300
      %vm506 = vcmp.eq.s32.totalorder %v338, %v300
      %vm507 = vcmp.eq.s32.totalorder %v326, %v301
      %vm508 = vcmp.eq.s32.totalorder %v330, %v301
      %vm509 = vcmp.eq.s32.totalorder %v334, %v301
      %vm510 = vcmp.eq.s32.totalorder %v338, %v301
      %vm511 = vcmp.eq.s32.totalorder %v326, %v302
      %vm512 = vcmp.eq.s32.totalorder %v330, %v302
      %vm513 = vcmp.eq.s32.totalorder %v334, %v302
      %vm514 = vcmp.eq.s32.totalorder %v338, %v302
      %vm515 = vcmp.eq.s32.totalorder %v326, %v303
      %vm516 = vcmp.eq.s32.totalorder %v330, %v303
      %vm517 = vcmp.eq.s32.totalorder %v334, %v303
      %vm518 = vcmp.eq.s32.totalorder %v338, %v303
      %vm519 = vcmp.eq.s32.totalorder %v326, %v304
      %vm520 = vcmp.eq.s32.totalorder %v330, %v304
      %vm521 = vcmp.eq.s32.totalorder %v334, %v304
      %vm522 = vcmp.eq.s32.totalorder %v338, %v304
      %vm523 = vcmp.eq.s32.totalorder %v326, %v305
      %vm524 = vcmp.eq.s32.totalorder %v330, %v305
      %vm525 = vcmp.eq.s32.totalorder %v334, %v305
      %vm526 = vcmp.eq.s32.totalorder %v338, %v305
      %vm527 = vcmp.eq.s32.totalorder %v326, %v306
      %vm528 = vcmp.eq.s32.totalorder %v330, %v306
      %vm529 = vcmp.eq.s32.totalorder %v334, %v306
      %vm530 = vcmp.eq.s32.totalorder %v338, %v306
      %vm531 = vcmp.eq.s32.totalorder %v326, %v307
      %vm532 = vcmp.eq.s32.totalorder %v330, %v307
      %vm533 = vcmp.eq.s32.totalorder %v334, %v307
      %vm534 = vcmp.eq.s32.totalorder %v338, %v307
      %vm535 = vcmp.eq.s32.totalorder %v326, %v308
      %vm536 = vcmp.eq.s32.totalorder %v330, %v308
      %vm537 = vcmp.eq.s32.totalorder %v334, %v308
      %vm538 = vcmp.eq.s32.totalorder %v338, %v308
      %vm539 = vcmp.eq.s32.totalorder %v326, %v309
      %vm540 = vcmp.eq.s32.totalorder %v330, %v309
      %vm541 = vcmp.eq.s32.totalorder %v334, %v309
      %vm542 = vcmp.eq.s32.totalorder %v338, %v309
      %vm543 = vcmp.eq.s32.totalorder %v326, %v310
      %vm544 = vcmp.eq.s32.totalorder %v330, %v310
      %vm545 = vcmp.eq.s32.totalorder %v334, %v310
      %vm546 = vcmp.eq.s32.totalorder %v338, %v310
      %vm547 = vcmp.eq.s32.totalorder %v326, %v311
      %vm548 = vcmp.eq.s32.totalorder %v330, %v311
      %vm549 = vcmp.eq.s32.totalorder %v334, %v311
      %vm550 = vcmp.eq.s32.totalorder %v338, %v311
      %vm551 = vcmp.eq.s32.totalorder %v326, %v312
      %vm552 = vcmp.eq.s32.totalorder %v330, %v312
      %vm553 = vcmp.eq.s32.totalorder %v334, %v312
      %vm554 = vcmp.eq.s32.totalorder %v338, %v312
      %vm555 = vcmp.eq.s32.totalorder %v326, %v313
      %vm556 = vcmp.eq.s32.totalorder %v330, %v313
      %vm557 = vcmp.eq.s32.totalorder %v334, %v313
      %vm558 = vcmp.eq.s32.totalorder %v338, %v313
      %vm559 = vcmp.eq.s32.totalorder %v326, %v314
      %vm560 = vcmp.eq.s32.totalorder %v330, %v314
      %vm561 = vcmp.eq.s32.totalorder %v334, %v314
      %vm562 = vcmp.eq.s32.totalorder %v338, %v314
      %vm563 = vcmp.eq.s32.totalorder %v326, %v315
      %vm564 = vcmp.eq.s32.totalorder %v330, %v315
      %vm565 = vcmp.eq.s32.totalorder %v334, %v315
      %vm566 = vcmp.eq.s32.totalorder %v338, %v315
      %vm567 = vcmp.eq.s32.totalorder %v326, %v316
      %vm568 = vcmp.eq.s32.totalorder %v330, %v316
      %vm569 = vcmp.eq.s32.totalorder %v334, %v316
      %vm570 = vcmp.eq.s32.totalorder %v338, %v316
      %vm571 = vcmp.eq.s32.totalorder %v326, %v317
      %vm572 = vcmp.eq.s32.totalorder %v330, %v317
      %vm573 = vcmp.eq.s32.totalorder %v334, %v317
      %vm574 = vcmp.eq.s32.totalorder %v338, %v317
      %vm575 = vcmp.eq.s32.totalorder %v326, %v318
      %vm576 = vcmp.eq.s32.totalorder %v330, %v318
      %vm577 = vcmp.eq.s32.totalorder %v334, %v318
      %vm578 = vcmp.eq.s32.totalorder %v338, %v318
      %vm579 = vcmp.eq.s32.totalorder %v326, %v319
      %vm580 = vcmp.eq.s32.totalorder %v330, %v319
      %vm581 = vcmp.eq.s32.totalorder %v334, %v319
      %vm582 = vcmp.eq.s32.totalorder %v338, %v319
      %vm583 = vcmp.eq.s32.totalorder %v326, %v320
      %vm584 = vcmp.eq.s32.totalorder %v330, %v320
      %vm585 = vcmp.eq.s32.totalorder %v334, %v320
      %vm586 = vcmp.eq.s32.totalorder %v338, %v320
      %vm587 = vcmp.eq.s32.totalorder %v326, %v321
      %vm588 = vcmp.eq.s32.totalorder %v330, %v321
      %vm589 = vcmp.eq.s32.totalorder %v334, %v321
      %vm590 = vcmp.eq.s32.totalorder %v338, %v321
      %vm591 = vcmp.eq.s32.totalorder %v326, %v322
      %vm592 = vcmp.eq.s32.totalorder %v330, %v322
      %vm593 = vcmp.eq.s32.totalorder %v334, %v322
      %vm594 = vcmp.eq.s32.totalorder %v338, %v322
      %v595 = vsel %vm339, 1, 0
      %v596 = vsel %vm340, 1, 0
      %v597 = vsel %vm341, 1, 0
      %v598 = vsel %vm342, 1, 0
      %v599 = vsel %vm343, 1, 0
      %v600 = vsel %vm344, 1, 0
      %v601 = vsel %vm345, 1, 0
      %v602 = vsel %vm346, 1, 0
      %v603 = vsel %vm347, 1, 0
      %v604 = vsel %vm348, 1, 0
      %v605 = vsel %vm349, 1, 0
      %v606 = vsel %vm350, 1, 0
      %v607 = vsel %vm351, 1, 0
      %v608 = vsel %vm352, 1, 0
      %v609 = vsel %vm353, 1, 0
      %v610 = vsel %vm354, 1, 0
      %v611 = vsel %vm355, 1, 0
      %v612 = vsel %vm356, 1, 0
      %v613 = vsel %vm357, 1, 0
      %v614 = vsel %vm358, 1, 0
      %v615 = vsel %vm359, 1, 0
      %v616 = vsel %vm360, 1, 0
      %v617 = vsel %vm361, 1, 0
      %v618 = vsel %vm362, 1, 0
      %v619 = vsel %vm363, 1, 0
      %v620 = vsel %vm364, 1, 0
      %v621 = vsel %vm365, 1, 0
      %v622 = vsel %vm366, 1, 0
      %v623 = vsel %vm367, 1, 0
      %v624 = vsel %vm368, 1, 0
      %v625 = vsel %vm369, 1, 0
      %v626 = vsel %vm370, 1, 0
      %v627 = vsel %vm371, 1, 0
      %v628 = vsel %vm372, 1, 0
      %v629 = vsel %vm373, 1, 0
      %v630 = vsel %vm374, 1, 0
      %v631 = vsel %vm375, 1, 0
      %v632 = vsel %vm376, 1, 0
      %v633 = vsel %vm377, 1, 0
      %v634 = vsel %vm378, 1, 0
      %v635 = vsel %vm379, 1, 0
      %v636 = vsel %vm380, 1, 0
      %v637 = vsel %vm381, 1, 0
      %v638 = vsel %vm382, 1, 0
      %v639 = vsel %vm383, 1, 0
      %v640 = vsel %vm384, 1, 0
      %v641 = vsel %vm385, 1, 0
      %v642 = vsel %vm386, 1, 0
      %v643 = vsel %vm387, 1, 0
      %v644 = vsel %vm388, 1, 0
      %v645 = vsel %vm389, 1, 0
      %v646 = vsel %vm390, 1, 0
      %v647 = vsel %vm391, 1, 0
      %v648 = vsel %vm392, 1, 0
      %v649 = vsel %vm393, 1, 0
      %v650 = vsel %vm394, 1, 0
      %v651 = vsel %vm395, 1, 0
      %v652 = vsel %vm396, 1, 0
      %v653 = vsel %vm397, 1, 0
      %v654 = vsel %vm398, 1, 0
      %v655 = vsel %vm399, 1, 0
      %v656 = vsel %vm400, 1, 0
      %v657 = vsel %vm401, 1, 0
      %v658 = vsel %vm402, 1, 0
      %v659 = vsel %vm403, 1, 0
      %v660 = vsel %vm404, 1, 0
      %v661 = vsel %vm405, 1, 0
      %v662 = vsel %vm406, 1, 0
      %v663 = vsel %vm407, 1, 0
      %v664 = vsel %vm408, 1, 0
      %v665 = vsel %vm409, 1, 0
      %v666 = vsel %vm410, 1, 0
      %v667 = vsel %vm411, 1, 0
      %v668 = vsel %vm412, 1, 0
      %v669 = vsel %vm413, 1, 0
      %v670 = vsel %vm414, 1, 0
      %v671 = vsel %vm415, 1, 0
      %v672 = vsel %vm416, 1, 0
      %v673 = vsel %vm417, 1, 0
      %v674 = vsel %vm418, 1, 0
      %v675 = vsel %vm419, 1, 0
      %v676 = vsel %vm420, 1, 0
      %v677 = vsel %vm421, 1, 0
      %v678 = vsel %vm422, 1, 0
      %v679 = vsel %vm423, 1, 0
      %v680 = vsel %vm424, 1, 0
      %v681 = vsel %vm425, 1, 0
      %v682 = vsel %vm426, 1, 0
      %v683 = vsel %vm427, 1, 0
      %v684 = vsel %vm428, 1, 0
      %v685 = vsel %vm429, 1, 0
      %v686 = vsel %vm430, 1, 0
      %v687 = vsel %vm431, 1, 0
      %v688 = vsel %vm432, 1, 0
      %v689 = vsel %vm433, 1, 0
      %v690 = vsel %vm434, 1, 0
      %v691 = vsel %vm435, 1, 0
      %v692 = vsel %vm436, 1, 0
      %v693 = vsel %vm437, 1, 0
      %v694 = vsel %vm438, 1, 0
      %v695 = vsel %vm439, 1, 0
      %v696 = vsel %vm440, 1, 0
      %v697 = vsel %vm441, 1, 0
      %v698 = vsel %vm442, 1, 0
      %v699 = vsel %vm443, 1, 0
      %v700 = vsel %vm444, 1, 0
      %v701 = vsel %vm445, 1, 0
      %v702 = vsel %vm446, 1, 0
      %v703 = vsel %vm447, 1, 0
      %v704 = vsel %vm448, 1, 0
      %v705 = vsel %vm449, 1, 0
      %v706 = vsel %vm450, 1, 0
      %v707 = vsel %vm451, 1, 0
      %v708 = vsel %vm452, 1, 0
      %v709 = vsel %vm453, 1, 0
      %v710 = vsel %vm454, 1, 0
      %v711 = vsel %vm455, 1, 0
      %v712 = vsel %vm456, 1, 0
      %v713 = vsel %vm457, 1, 0
      %v714 = vsel %vm458, 1, 0
      %v715 = vsel %vm459, 1, 0
      %v716 = vsel %vm460, 1, 0
      %v717 = vsel %vm461, 1, 0
      %v718 = vsel %vm462, 1, 0
      %v719 = vsel %vm463, 1, 0
      %v720 = vsel %vm464, 1, 0
      %v721 = vsel %vm465, 1, 0
      %v722 = vsel %vm466, 1, 0
      %v723 = vsel %vm467, 1, 0
      %v724 = vsel %vm468, 1, 0
      %v725 = vsel %vm469, 1, 0
      %v726 = vsel %vm470, 1, 0
      %v727 = vsel %vm471, 1, 0
      %v728 = vsel %vm472, 1, 0
      %v729 = vsel %vm473, 1, 0
      %v730 = vsel %vm474, 1, 0
      %v731 = vsel %vm475, 1, 0
      %v732 = vsel %vm476, 1, 0
      %v733 = vsel %vm477, 1, 0
      %v734 = vsel %vm478, 1, 0
      %v735 = vsel %vm479, 1, 0
      %v736 = vsel %vm480, 1, 0
      %v737 = vsel %vm481, 1, 0
      %v738 = vsel %vm482, 1, 0
      %v739 = vsel %vm483, 1, 0
      %v740 = vsel %vm484, 1, 0
      %v741 = vsel %vm485, 1, 0
      %v742 = vsel %vm486, 1, 0
      %v743 = vsel %vm487, 1, 0
      %v744 = vsel %vm488, 1, 0
      %v745 = vsel %vm489, 1, 0
      %v746 = vsel %vm490, 1, 0
      %v747 = vsel %vm491, 1, 0
      %v748 = vsel %vm492, 1, 0
      %v749 = vsel %vm493, 1, 0
      %v750 = vsel %vm494, 1, 0
      %v751 = vsel %vm495, 1, 0
      %v752 = vsel %vm496, 1, 0
      %v753 = vsel %vm497, 1, 0
      %v754 = vsel %vm498, 1, 0
      %v755 = vsel %vm499, 1, 0
      %v756 = vsel %vm500, 1, 0
      %v757 = vsel %vm501, 1, 0
      %v758 = vsel %vm502, 1, 0
      %v759 = vsel %vm503, 1, 0
      %v760 = vsel %vm504, 1, 0
      %v761 = vsel %vm505, 1, 0
      %v762 = vsel %vm506, 1, 0
      %v763 = vsel %vm507, 1, 0
      %v764 = vsel %vm508, 1, 0
      %v765 = vsel %vm509, 1, 0
      %v766 = vsel %vm510, 1, 0
      %v767 = vsel %vm511, 1, 0
      %v768 = vsel %vm512, 1, 0
      %v769 = vsel %vm513, 1, 0
      %v770 = vsel %vm514, 1, 0
      %v771 = vsel %vm515, 1, 0
      %v772 = vsel %vm516, 1, 0
      %v773 = vsel %vm517, 1, 0
      %v774 = vsel %vm518, 1, 0
      %v775 = vsel %vm519, 1, 0
      %v776 = vsel %vm520, 1, 0
      %v777 = vsel %vm521, 1, 0
      %v778 = vsel %vm522, 1, 0
      %v779 = vsel %vm523, 1, 0
      %v780 = vsel %vm524, 1, 0
      %v781 = vsel %vm525, 1, 0
      %v782 = vsel %vm526, 1, 0
      %v783 = vsel %vm527, 1, 0
      %v784 = vsel %vm528, 1, 0
      %v785 = vsel %vm529, 1, 0
      %v786 = vsel %vm530, 1, 0
      %v787 = vsel %vm531, 1, 0
      %v788 = vsel %vm532, 1, 0
      %v789 = vsel %vm533, 1, 0
      %v790 = vsel %vm534, 1, 0
      %v791 = vsel %vm535, 1, 0
      %v792 = vsel %vm536, 1, 0
      %v793 = vsel %vm537, 1, 0
      %v794 = vsel %vm538, 1, 0
      %v795 = vsel %vm539, 1, 0
      %v796 = vsel %vm540, 1, 0
      %v797 = vsel %vm541, 1, 0
      %v798 = vsel %vm542, 1, 0
      %v799 = vsel %vm543, 1, 0
      %v800 = vsel %vm544, 1, 0
      %v801 = vsel %vm545, 1, 0
      %v802 = vsel %vm546, 1, 0
      %v803 = vsel %vm547, 1, 0
      %v804 = vsel %vm548, 1, 0
      %v805 = vsel %vm549, 1, 0
      %v806 = vsel %vm550, 1, 0
      %v807 = vsel %vm551, 1, 0
      %v808 = vsel %vm552, 1, 0
      %v809 = vsel %vm553, 1, 0
      %v810 = vsel %vm554, 1, 0
      %v811 = vsel %vm555, 1, 0
      %v812 = vsel %vm556, 1, 0
      %v813 = vsel %vm557, 1, 0
      %v814 = vsel %vm558, 1, 0
      %v815 = vsel %vm559, 1, 0
      %v816 = vsel %vm560, 1, 0
      %v817 = vsel %vm561, 1, 0
      %v818 = vsel %vm562, 1, 0
      %v819 = vsel %vm563, 1, 0
      %v820 = vsel %vm564, 1, 0
      %v821 = vsel %vm565, 1, 0
      %v822 = vsel %vm566, 1, 0
      %v823 = vsel %vm567, 1, 0
      %v824 = vsel %vm568, 1, 0
      %v825 = vsel %vm569, 1, 0
      %v826 = vsel %vm570, 1, 0
      %v827 = vsel %vm571, 1, 0
      %v828 = vsel %vm572, 1, 0
      %v829 = vsel %vm573, 1, 0
      %v830 = vsel %vm574, 1, 0
      %v831 = vsel %vm575, 1, 0
      %v832 = vsel %vm576, 1, 0
      %v833 = vsel %vm577, 1, 0
      %v834 = vsel %vm578, 1, 0
      %v835 = vsel %vm579, 1, 0
      %v836 = vsel %vm580, 1, 0
      %v837 = vsel %vm581, 1, 0
      %v838 = vsel %vm582, 1, 0
      %v839 = vsel %vm583, 1, 0
      %v840 = vsel %vm584, 1, 0
      %v841 = vsel %vm585, 1, 0
      %v842 = vsel %vm586, 1, 0
      %v843 = vsel %vm587, 1, 0
      %v844 = vsel %vm588, 1, 0
      %v845 = vsel %vm589, 1, 0
      %v846 = vsel %vm590, 1, 0
      %v847 = vsel %vm591, 1, 0
      %v848 = vsel %vm592, 1, 0
      %v849 = vsel %vm593, 1, 0
      %v850 = vsel %vm594, 1, 0
      %v851 = vcvt.s32.f32 %v595
      %v852 = vcvt.s32.f32 %v596
      %v853 = vcvt.s32.f32 %v597
      %v854 = vcvt.s32.f32 %v598
      %v855 = vcvt.s32.f32 %v599
      %v856 = vcvt.s32.f32 %v600
      %v857 = vcvt.s32.f32 %v601
      %v858 = vcvt.s32.f32 %v602
      %v859 = vcvt.s32.f32 %v603
      %v860 = vcvt.s32.f32 %v604
      %v861 = vcvt.s32.f32 %v605
      %v862 = vcvt.s32.f32 %v606
      %v863 = vcvt.s32.f32 %v607
      %v864 = vcvt.s32.f32 %v608
      %v865 = vcvt.s32.f32 %v609
      %v866 = vcvt.s32.f32 %v610
      %v867 = vcvt.s32.f32 %v611
      %v868 = vcvt.s32.f32 %v612
      %v869 = vcvt.s32.f32 %v613
      %v870 = vcvt.s32.f32 %v614
      %v871 = vcvt.s32.f32 %v615
      %v872 = vcvt.s32.f32 %v616
      %v873 = vcvt.s32.f32 %v617
      %v874 = vcvt.s32.f32 %v618
      %v875 = vcvt.s32.f32 %v619
      %v876 = vcvt.s32.f32 %v620
      %v877 = vcvt.s32.f32 %v621
      %v878 = vcvt.s32.f32 %v622
      %v879 = vcvt.s32.f32 %v623
      %v880 = vcvt.s32.f32 %v624
      %v881 = vcvt.s32.f32 %v625
      %v882 = vcvt.s32.f32 %v626
      %v883 = vcvt.s32.f32 %v627
      %v884 = vcvt.s32.f32 %v628
      %v885 = vcvt.s32.f32 %v629
      %v886 = vcvt.s32.f32 %v630
      %v887 = vcvt.s32.f32 %v631
      %v888 = vcvt.s32.f32 %v632
      %v889 = vcvt.s32.f32 %v633
      %v890 = vcvt.s32.f32 %v634
      %v891 = vcvt.s32.f32 %v635
      %v892 = vcvt.s32.f32 %v636
      %v893 = vcvt.s32.f32 %v637
      %v894 = vcvt.s32.f32 %v638
      %v895 = vcvt.s32.f32 %v639
      %v896 = vcvt.s32.f32 %v640
      %v897 = vcvt.s32.f32 %v641
      %v898 = vcvt.s32.f32 %v642
      %v899 = vcvt.s32.f32 %v643
      %v900 = vcvt.s32.f32 %v644
      %v901 = vcvt.s32.f32 %v645
      %v902 = vcvt.s32.f32 %v646
      %v903 = vcvt.s32.f32 %v647
      %v904 = vcvt.s32.f32 %v648
      %v905 = vcvt.s32.f32 %v649
      %v906 = vcvt.s32.f32 %v650
      %v907 = vcvt.s32.f32 %v651
      %v908 = vcvt.s32.f32 %v652
      %v909 = vcvt.s32.f32 %v653
      %v910 = vcvt.s32.f32 %v654
      %v911 = vcvt.s32.f32 %v655
      %v912 = vcvt.s32.f32 %v656
      %v913 = vcvt.s32.f32 %v657
      %v914 = vcvt.s32.f32 %v658
      %v915 = vcvt.s32.f32 %v659
      %v916 = vcvt.s32.f32 %v660
      %v917 = vcvt.s32.f32 %v661
      %v918 = vcvt.s32.f32 %v662
      %v919 = vcvt.s32.f32 %v663
      %v920 = vcvt.s32.f32 %v664
      %v921 = vcvt.s32.f32 %v665
      %v922 = vcvt.s32.f32 %v666
      %v923 = vcvt.s32.f32 %v667
      %v924 = vcvt.s32.f32 %v668
      %v925 = vcvt.s32.f32 %v669
      %v926 = vcvt.s32.f32 %v670
      %v927 = vcvt.s32.f32 %v671
      %v928 = vcvt.s32.f32 %v672
      %v929 = vcvt.s32.f32 %v673
      %v930 = vcvt.s32.f32 %v674
      %v931 = vcvt.s32.f32 %v675
      %v932 = vcvt.s32.f32 %v676
      %v933 = vcvt.s32.f32 %v677
      %v934 = vcvt.s32.f32 %v678
      %v935 = vcvt.s32.f32 %v679
      %v936 = vcvt.s32.f32 %v680
      %v937 = vcvt.s32.f32 %v681
      %v938 = vcvt.s32.f32 %v682
      %v939 = vcvt.s32.f32 %v683
      %v940 = vcvt.s32.f32 %v684
      %v941 = vcvt.s32.f32 %v685
      %v942 = vcvt.s32.f32 %v686
      %v943 = vcvt.s32.f32 %v687
      %v944 = vcvt.s32.f32 %v688
      %v945 = vcvt.s32.f32 %v689
      %v946 = vcvt.s32.f32 %v690
      %v947 = vcvt.s32.f32 %v691
      %v948 = vcvt.s32.f32 %v692
      %v949 = vcvt.s32.f32 %v693
      %v950 = vcvt.s32.f32 %v694
      %v951 = vcvt.s32.f32 %v695
      %v952 = vcvt.s32.f32 %v696
      %v953 = vcvt.s32.f32 %v697
      %v954 = vcvt.s32.f32 %v698
      %v955 = vcvt.s32.f32 %v699
      %v956 = vcvt.s32.f32 %v700
      %v957 = vcvt.s32.f32 %v701
      %v958 = vcvt.s32.f32 %v702
      %v959 = vcvt.s32.f32 %v703
      %v960 = vcvt.s32.f32 %v704
      %v961 = vcvt.s32.f32 %v705
      %v962 = vcvt.s32.f32 %v706
      %v963 = vcvt.s32.f32 %v707
      %v964 = vcvt.s32.f32 %v708
      %v965 = vcvt.s32.f32 %v709
      %v966 = vcvt.s32.f32 %v710
      %v967 = vcvt.s32.f32 %v711
      %v968 = vcvt.s32.f32 %v712
      %v969 = vcvt.s32.f32 %v713
      %v970 = vcvt.s32.f32 %v714
      %v971 = vcvt.s32.f32 %v715
      %v972 = vcvt.s32.f32 %v716
      %v973 = vcvt.s32.f32 %v717
      %v974 = vcvt.s32.f32 %v718
      %v975 = vcvt.s32.f32 %v719
      %v976 = vcvt.s32.f32 %v720
      %v977 = vcvt.s32.f32 %v721
      %v978 = vcvt.s32.f32 %v722
      %v979 = vcvt.s32.f32 %v723
      %v980 = vcvt.s32.f32 %v724
      %v981 = vcvt.s32.f32 %v725
      %v982 = vcvt.s32.f32 %v726
      %v983 = vcvt.s32.f32 %v727
      %v984 = vcvt.s32.f32 %v728
      %v985 = vcvt.s32.f32 %v729
      %v986 = vcvt.s32.f32 %v730
      %v987 = vcvt.s32.f32 %v731
      %v988 = vcvt.s32.f32 %v732
      %v989 = vcvt.s32.f32 %v733
      %v990 = vcvt.s32.f32 %v734
      %v991 = vcvt.s32.f32 %v735
      %v992 = vcvt.s32.f32 %v736
      %v993 = vcvt.s32.f32 %v737
      %v994 = vcvt.s32.f32 %v738
      %v995 = vcvt.s32.f32 %v739
      %v996 = vcvt.s32.f32 %v740
      %v997 = vcvt.s32.f32 %v741
      %v998 = vcvt.s32.f32 %v742
      %v999 = vcvt.s32.f32 %v743
      %v1000 = vcvt.s32.f32 %v744
      %v1001 = vcvt.s32.f32 %v745
      %v1002 = vcvt.s32.f32 %v746
      %v1003 = vcvt.s32.f32 %v747
      %v1004 = vcvt.s32.f32 %v748
      %v1005 = vcvt.s32.f32 %v749
      %v1006 = vcvt.s32.f32 %v750
      %v1007 = vcvt.s32.f32 %v751
      %v1008 = vcvt.s32.f32 %v752
      %v1009 = vcvt.s32.f32 %v753
      %v1010 = vcvt.s32.f32 %v754
      %v1011 = vcvt.s32.f32 %v755
      %v1012 = vcvt.s32.f32 %v756
      %v1013 = vcvt.s32.f32 %v757
      %v1014 = vcvt.s32.f32 %v758
      %v1015 = vcvt.s32.f32 %v759
      %v1016 = vcvt.s32.f32 %v760
      %v1017 = vcvt.s32.f32 %v761
      %v1018 = vcvt.s32.f32 %v762
      %v1019 = vcvt.s32.f32 %v763
      %v1020 = vcvt.s32.f32 %v764
      %v1021 = vcvt.s32.f32 %v765
      %v1022 = vcvt.s32.f32 %v766
      %v1023 = vcvt.s32.f32 %v767
      %v1024 = vcvt.s32.f32 %v768
      %v1025 = vcvt.s32.f32 %v769
      %v1026 = vcvt.s32.f32 %v770
      %v1027 = vcvt.s32.f32 %v771
      %v1028 = vcvt.s32.f32 %v772
      %v1029 = vcvt.s32.f32 %v773
      %v1030 = vcvt.s32.f32 %v774
      %v1031 = vcvt.s32.f32 %v775
      %v1032 = vcvt.s32.f32 %v776
      %v1033 = vcvt.s32.f32 %v777
      %v1034 = vcvt.s32.f32 %v778
      %v1035 = vcvt.s32.f32 %v779
      %v1036 = vcvt.s32.f32 %v780
      %v1037 = vcvt.s32.f32 %v781
      %v1038 = vcvt.s32.f32 %v782
      %v1039 = vcvt.s32.f32 %v783
      %v1040 = vcvt.s32.f32 %v784
      %v1041 = vcvt.s32.f32 %v785
      %v1042 = vcvt.s32.f32 %v786
      %v1043 = vcvt.s32.f32 %v787
      %v1044 = vcvt.s32.f32 %v788
      %v1045 = vcvt.s32.f32 %v789
      %v1046 = vcvt.s32.f32 %v790
      %v1047 = vcvt.s32.f32 %v791
      %v1048 = vcvt.s32.f32 %v792
      %v1049 = vcvt.s32.f32 %v793
      %v1050 = vcvt.s32.f32 %v794
      %v1051 = vcvt.s32.f32 %v795
      %v1052 = vcvt.s32.f32 %v796
      %v1053 = vcvt.s32.f32 %v797
      %v1054 = vcvt.s32.f32 %v798
      %v1055 = vcvt.s32.f32 %v799
      %v1056 = vcvt.s32.f32 %v800
      %v1057 = vcvt.s32.f32 %v801
      %v1058 = vcvt.s32.f32 %v802
      %v1059 = vcvt.s32.f32 %v803
      %v1060 = vcvt.s32.f32 %v804
      %v1061 = vcvt.s32.f32 %v805
      %v1062 = vcvt.s32.f32 %v806
      %v1063 = vcvt.s32.f32 %v807
      %v1064 = vcvt.s32.f32 %v808
      %v1065 = vcvt.s32.f32 %v809
      %v1066 = vcvt.s32.f32 %v810
      %v1067 = vcvt.s32.f32 %v811
      %v1068 = vcvt.s32.f32 %v812
      %v1069 = vcvt.s32.f32 %v813
      %v1070 = vcvt.s32.f32 %v814
      %v1071 = vcvt.s32.f32 %v815
      %v1072 = vcvt.s32.f32 %v816
      %v1073 = vcvt.s32.f32 %v817
      %v1074 = vcvt.s32.f32 %v818
      %v1075 = vcvt.s32.f32 %v819
      %v1076 = vcvt.s32.f32 %v820
      %v1077 = vcvt.s32.f32 %v821
      %v1078 = vcvt.s32.f32 %v822
      %v1079 = vcvt.s32.f32 %v823
      %v1080 = vcvt.s32.f32 %v824
      %v1081 = vcvt.s32.f32 %v825
      %v1082 = vcvt.s32.f32 %v826
      %v1083 = vcvt.s32.f32 %v827
      %v1084 = vcvt.s32.f32 %v828
      %v1085 = vcvt.s32.f32 %v829
      %v1086 = vcvt.s32.f32 %v830
      %v1087 = vcvt.s32.f32 %v831
      %v1088 = vcvt.s32.f32 %v832
      %v1089 = vcvt.s32.f32 %v833
      %v1090 = vcvt.s32.f32 %v834
      %v1091 = vcvt.s32.f32 %v835
      %v1092 = vcvt.s32.f32 %v836
      %v1093 = vcvt.s32.f32 %v837
      %v1094 = vcvt.s32.f32 %v838
      %v1095 = vcvt.s32.f32 %v839
      %v1096 = vcvt.s32.f32 %v840
      %v1097 = vcvt.s32.f32 %v841
      %v1098 = vcvt.s32.f32 %v842
      %v1099 = vcvt.s32.f32 %v843
      %v1100 = vcvt.s32.f32 %v844
      %v1101 = vcvt.s32.f32 %v845
      %v1102 = vcvt.s32.f32 %v846
      %v1103 = vcvt.s32.f32 %v847
      %v1104 = vcvt.s32.f32 %v848
      %v1105 = vcvt.s32.f32 %v849
      %v1106 = vcvt.s32.f32 %v850
      %v1107 = vld [vmem:[%s1] sm:$0xff]
      %v1108 = vld [vmem:[%s1 + $0x8] sm:$0xff]
      %v1109 = vld [vmem:[%s1 + $0x10] sm:$0xff]
      %v1110 = vld [vmem:[%s1 + $0x18] sm:$0xff]
      %v1111 = vld [vmem:[%s1 + $0x20] sm:$0xff]
      %v1112 = vld [vmem:[%s1 + $0x28] sm:$0xff]
      %v1113 = vld [vmem:[%s1 + $0x30] sm:$0xff]
      %v1114 = vld [vmem:[%s1 + $0x38] sm:$0xff]
      %v1115 = vld [vmem:[%s1 + $0x40] sm:$0xff]
      %v1116 = vld [vmem:[%s1 + $0x48] sm:$0xff]
      %v1117 = vld [vmem:[%s1 + $0x50] sm:$0xff]
      %v1118 = vld [vmem:[%s1 + $0x58] sm:$0xff]
      %v1119 = vld [vmem:[%s1 + $0x60] sm:$0xff]
      %v1120 = vld [vmem:[%s1 + $0x68] sm:$0xff]
      %v1121 = vld [vmem:[%s1 + $0x70] sm:$0xff]
      %v1122 = vld [vmem:[%s1 + $0x78] sm:$0xff]
      %v1123 = vld [vmem:[%s1 + $0x80] sm:$0xff]
      %v1124 = vld [vmem:[%s1 + $0x88] sm:$0xff]
      %v1125 = vld [vmem:[%s1 + $0x90] sm:$0xff]
      %v1126 = vld [vmem:[%s1 + $0x98] sm:$0xff]
      %v1127 = vld [vmem:[%s1 + $0xa0] sm:$0xff]
      %v1128 = vld [vmem:[%s1 + $0xa8] sm:$0xff]
      %v1129 = vld [vmem:[%s1 + $0xb0] sm:$0xff]
      %v1130 = vld [vmem:[%s1 + $0xb8] sm:$0xff]
      %v1131 = vld [vmem:[%s1 + $0xc0] sm:$0xff]
      %v1132 = vld [vmem:[%s1 + $0xc8] sm:$0xff]
      %v1133 = vld [vmem:[%s1 + $0xd0] sm:$0xff]
      %v1134 = vld [vmem:[%s1 + $0xd8] sm:$0xff]
      %v1135 = vld [vmem:[%s1 + $0xe0] sm:$0xff]
      %v1136 = vld [vmem:[%s1 + $0xe8] sm:$0xff]
      %v1137 = vld [vmem:[%s1 + $0xf0] sm:$0xff]
      %v1138 = vld [vmem:[%s1 + $0xf8] sm:$0xff]
      %v1139 = vld [vmem:[%s1 + $0x100] sm:$0xff]
      %v1140 = vld [vmem:[%s1 + $0x108] sm:$0xff]
      %v1141 = vld [vmem:[%s1 + $0x110] sm:$0xff]
      %v1142 = vld [vmem:[%s1 + $0x118] sm:$0xff]
      %1143 = vmatprep.subr.mxu0 %v852
      %1144 = vmatpush1.msra.mxu0 %v851
      %1145 = vmatprep.subr.mxu0 %v856
      %1146 = vmatpush1.msra.mxu0 %v855
      %1147 = vmatprep.subr.mxu0 %v860
      %1148 = vmatpush1.msra.mxu0 %v859
      %1149 = vmatprep.subr.mxu0 %v864
      %1150 = vmatpush1.msra.mxu0 %v863
      %1151 = vmatprep.subr.mxu0 %v868
      %1152 = vmatpush1.msra.mxu0 %v867
      %1153 = vmatprep.subr.mxu0 %v872
      %1154 = vmatpush1.msra.mxu0 %v871
      %1155 = vmatprep.subr.mxu0 %v876
      %1156 = vmatpush1.msra.mxu0 %v875
      %1157 = vmatprep.subr.mxu0 %v880
      %1158 = vmatpush1.msra.mxu0 %v879
      %1159 = vmatprep.subr.mxu0 %v884
      %1160 = vmatpush1.msra.mxu0 %v883
      %1161 = vmatprep.subr.mxu0 %v888
      %1162 = vmatpush1.msra.mxu0 %v887
      %1163 = vmatprep.subr.mxu0 %v892
      %1164 = vmatpush1.msra.mxu0 %v891
      %1165 = vmatprep.subr.mxu0 %v896
      %1166 = vmatpush1.msra.mxu0 %v895
      %1167 = vmatprep.subr.mxu0 %v900
      %1168 = vmatpush1.msra.mxu0 %v899
      %1169 = vmatprep.subr.mxu0 %v904
      %1170 = vmatpush1.msra.mxu0 %v903
      %1171 = vmatprep.subr.mxu0 %v908
      %1172 = vmatpush1.msra.mxu0 %v907
      %1173 = vmatprep.subr.mxu0 %v912
      %1174 = vmatpush1.msra.mxu0 %v911
      %1175 = vmatprep.subr.mxu0 %v916
      %1176 = vmatpush1.msra.mxu0 %v915
      %1177 = vmatprep.subr.mxu0 %v920
      %1178 = vmatpush1.msra.mxu0 %v919
      %1179 = vmatprep.subr.mxu0 %v924
      %1180 = vmatpush1.msra.mxu0 %v923
      %1181 = vmatprep.subr.mxu0 %v928
      %1182 = vmatpush1.msra.mxu0 %v927
      %1183 = vmatprep.subr.mxu0 %v932
      %1184 = vmatpush1.msra.mxu0 %v931
      %1185 = vmatprep.subr.mxu0 %v936
      %1186 = vmatpush1.msra.mxu0 %v935
      %1187 = vmatprep.subr.mxu0 %v940
      %1188 = vmatpush1.msra.mxu0 %v939
      %1189 = vmatprep.subr.mxu0 %v944
      %1190 = vmatpush1.msra.mxu0 %v943
      %1191 = vmatprep.subr.mxu0 %v948
      %1192 = vmatpush1.msra.mxu0 %v947
      %1193 = vmatprep.subr.mxu0 %v952
      %1194 = vmatpush1.msra.mxu0 %v951
      %1195 = vmatprep.subr.mxu0 %v956
      %1196 = vmatpush1.msra.mxu0 %v955
      %1197 = vmatprep.subr.mxu0 %v960
      %1198 = vmatpush1.msra.mxu0 %v959
      %1199 = vmatprep.subr.mxu0 %v964
      %1200 = vmatpush1.msra.mxu0 %v963
      %1201 = vmatprep.subr.mxu0 %v968
      %1202 = vmatpush1.msra.mxu0 %v967
      %1203 = vmatprep.subr.mxu0 %v972
      %1204 = vmatpush1.msra.mxu0 %v971
      %1205 = vmatprep.subr.mxu0 %v976
      %1206 = vmatpush1.msra.mxu0 %v975
      %1207 = vmatprep.mubr.f32.mxu0 %v1108
      %1208 = vmatmul.mubr.f32.gmra.mrb[0].mxu0 %v1107
      %v1209 = vpop.f32.mrb[0].mxu0
      %v1210 = vadd.f32 0.0, %v1209
      %v1211 = vpop.f32.mrb[0].mxu0
      %v1212 = vadd.f32 0.0, %v1211
      %1213 = vmatprep.mubr.f32.mxu0 %v1112
      %1214 = vmatmul.mubr.f32.gmra.mrb[0].mxu0 %v1111
      %v1215 = vpop.f32.mrb[0].mxu0
      %v1216 = vadd.f32 0.0, %v1215
      %v1217 = vpop.f32.mrb[0].mxu0
      %v1218 = vadd.f32 0.0, %v1217
      %1219 = vmatprep.mubr.f32.mxu0 %v1116
      %1220 = vmatmul.mubr.f32.gmra.mrb[0].mxu0 %v1115
      %v1221 = vpop.f32.mrb[0].mxu0
      %v1222 = vadd.f32 0.0, %v1221
      %v1223 = vpop.f32.mrb[0].mxu0
      %v1224 = vadd.f32 0.0, %v1223
      %1225 = vmatprep.mubr.f32.mxu0 %v1120
      %1226 = vmatmul.mubr.f32.gmra.mrb[0].mxu0 %v1119
      %v1227 = vpop.f32.mrb[0].mxu0
      %v1228 = vadd.f32 0.0, %v1227
      %v1229 = vpop.f32.mrb[0].mxu0
      %v1230 = vadd.f32 0.0, %v1229
      %1231 = vmatprep.mubr.f32.mxu0 %v1124
      %1232 = vmatmul.mubr.f32.gmra.mrb[0].mxu0 %v1123
      %v1233 = vpop.f32.mrb[0].mxu0
      %v1234 = vadd.f32 0.0, %v1233
      %v1235 = vpop.f32.mrb[0].mxu0
      %v1236 = vadd.f32 0.0, %v1235
      %1237 = vmatprep.mubr.f32.mxu0 %v1128
      %1238 = vmatmul.mubr.f32.gmra.mrb[0].mxu0 %v1127
      %v1239 = vpop.f32.mrb[0].mxu0
      %v1240 = vadd.f32 0.0, %v1239
      %v1241 = vpop.f32.mrb[0].mxu0
      %v1242 = vadd.f32 0.0, %v1241
      %1243 = vmatprep.mubr.f32.mxu0 %v1132
      %1244 = vmatmul.mubr.f32.gmra.mrb[0].mxu0 %v1131
      %v1245 = vpop.f32.mrb[0].mxu0
      %v1246 = vadd.f32 0.0, %v1245
      %v1247 = vpop.f32.mrb[0].mxu0
      %v1248 = vadd.f32 0.0, %v1247
      %1249 = vmatprep.mubr.f32.mxu0 %v1136
      %1250 = vmatmul.mubr.f32.gmra.mrb[0].mxu0 %v1135
      %v1251 = vpop.f32.mrb[0].mxu0
      %v1252 = vadd.f32 0.0, %v1251
      %v1253 = vpop.f32.mrb[0].mxu0
      %v1254 = vadd.f32 0.0, %v1253
      %1255 = vmatprep.mubr.f32.mxu0 %v1140
      %1256 = vmatmul.mubr.f32.gmra.mrb[0].mxu0 %v1139
      %v1257 = vpop.f32.mrb[0].mxu0
      %v1258 = vadd.f32 0.0, %v1257
      %v1259 = vpop.f32.mrb[0].mxu0
      %v1260 = vadd.f32 0.0, %v1259
      %1261 = vdwg.mxu0
      %1262 = vmatprep.subr.mxu0 %v980
      %1263 = vmatpush1.msra.mxu0 %v979
      %1264 = vmatprep.subr.mxu0 %v984
      %1265 = vmatpush1.msra.mxu0 %v983
      %1266 = vmatprep.subr.mxu0 %v988
      %1267 = vmatpush1.msra.mxu0 %v987
      %1268 = vmatprep.subr.mxu0 %v992
      %1269 = vmatpush1.msra.mxu0 %v991
      %1270 = vmatprep.subr.mxu0 %v996
      %1271 = vmatpush1.msra.mxu0 %v995
      %1272 = vmatprep.subr.mxu0 %v1000
      %1273 = vmatpush1.msra.mxu0 %v999
      %1274 = vmatprep.subr.mxu0 %v1004
      %1275 = vmatpush1.msra.mxu0 %v1003
      %1276 = vmatprep.subr.mxu0 %v1008
      %1277 = vmatpush1.msra.mxu0 %v1007
      %1278 = vmatprep.subr.mxu0 %v1012
      %1279 = vmatpush1.msra.mxu0 %v1011
      %1280 = vmatprep.subr.mxu0 %v1016
      %1281 = vmatpush1.msra.mxu0 %v1015
      %1282 = vmatprep.subr.mxu0 %v1020
      %1283 = vmatpush1.msra.mxu0 %v1019
      %1284 = vmatprep.subr.mxu0 %v1024
      %1285 = vmatpush1.msra.mxu0 %v1023
      %1286 = vmatprep.subr.mxu0 %v1028
      %1287 = vmatpush1.msra.mxu0 %v1027
      %1288 = vmatprep.subr.mxu0 %v1032
      %1289 = vmatpush1.msra.mxu0 %v1031
      %1290 = vmatprep.subr.mxu0 %v1036
      %1291 = vmatpush1.msra.mxu0 %v1035
      %1292 = vmatprep.subr.mxu0 %v1040
      %1293 = vmatpush1.msra.mxu0 %v1039
      %1294 = vmatprep.subr.mxu0 %v1044
      %1295 = vmatpush1.msra.mxu0 %v1043
      %1296 = vmatprep.subr.mxu0 %v1048
      %1297 = vmatpush1.msra.mxu0 %v1047
      %1298 = vmatprep.subr.mxu0 %v1052
      %1299 = vmatpush1.msra.mxu0 %v1051
      %1300 = vmatprep.subr.mxu0 %v1056
      %1301 = vmatpush1.msra.mxu0 %v1055
      %1302 = vmatprep.subr.mxu0 %v1060
      %1303 = vmatpush1.msra.mxu0 %v1059
      %1304 = vmatprep.subr.mxu0 %v1064
      %1305 = vmatpush1.msra.mxu0 %v1063
      %1306 = vmatprep.subr.mxu0 %v1068
      %1307 = vmatpush1.msra.mxu0 %v1067
      %1308 = vmatprep.subr.mxu0 %v1072
      %1309 = vmatpush1.msra.mxu0 %v1071
      %1310 = vmatprep.subr.mxu0 %v1076
      %1311 = vmatpush1.msra.mxu0 %v1075
      %1312 = vmatprep.subr.mxu0 %v1080
      %1313 = vmatpush1.msra.mxu0 %v1079
      %1314 = vmatprep.subr.mxu0 %v1084
      %1315 = vmatpush1.msra.mxu0 %v1083
      %1316 = vmatprep.subr.mxu0 %v1088
      %1317 = vmatpush1.msra.mxu0 %v1087
      %1318 = vmatprep.subr.mxu0 %v1092
      %1319 = vmatpush1.msra.mxu0 %v1091
      %1320 = vmatprep.subr.mxu0 %v1096
      %1321 = vmatpush1.msra.mxu0 %v1095
      %1322 = vmatprep.subr.mxu0 %v1100
      %1323 = vmatpush1.msra.mxu0 %v1099
      %1324 = vmatprep.subr.mxu0 %v1104
      %1325 = vmatpush1.msra.mxu0 %v1103
      %1326 = vmatprep.mubr.f32.mxu0 %v1110
      %1327 = vmatmul.mubr.f32.gmra.mrb[0].mxu0 %v1109
      %v1328 = vpop.f32.mrb[0].mxu0
      %v1329 = vadd.f32 %v1210, %v1328
      %v1330 = vpop.f32.mrb[0].mxu0
      %v1331 = vadd.f32 %v1212, %v1330
      %1332 = vmatprep.mubr.f32.mxu0 %v1114
      %1333 = vmatmul.mubr.f32.gmra.mrb[0].mxu0 %v1113
      %v1334 = vpop.f32.mrb[0].mxu0
      %v1335 = vadd.f32 %v1216, %v1334
      %v1336 = vpop.f32.mrb[0].mxu0
      %v1337 = vadd.f32 %v1218, %v1336
      %1338 = vmatprep.mubr.f32.mxu0 %v1118
      %1339 = vmatmul.mubr.f32.gmra.mrb[0].mxu0 %v1117
      %v1340 = vpop.f32.mrb[0].mxu0
      %v1341 = vadd.f32 %v1222, %v1340
      %v1342 = vpop.f32.mrb[0].mxu0
      %v1343 = vadd.f32 %v1224, %v1342
      %1344 = vmatprep.mubr.f32.mxu0 %v1122
      %1345 = vmatmul.mubr.f32.gmra.mrb[0].mxu0 %v1121
      %v1346 = vpop.f32.mrb[0].mxu0
      %v1347 = vadd.f32 %v1228, %v1346
      %v1348 = vpop.f32.mrb[0].mxu0
      %v1349 = vadd.f32 %v1230, %v1348
      %1350 = vmatprep.mubr.f32.mxu0 %v1126
      %1351 = vmatmul.mubr.f32.gmra.mrb[0].mxu0 %v1125
      %v1352 = vpop.f32.mrb[0].mxu0
      %v1353 = vadd.f32 %v1234, %v1352
      %v1354 = vpop.f32.mrb[0].mxu0
      %v1355 = vadd.f32 %v1236, %v1354
      %1356 = vmatprep.mubr.f32.mxu0 %v1130
      %1357 = vmatmul.mubr.f32.gmra.mrb[0].mxu0 %v1129
      %v1358 = vpop.f32.mrb[0].mxu0
      %v1359 = vadd.f32 %v1240, %v1358
      %v1360 = vpop.f32.mrb[0].mxu0
      %v1361 = vadd.f32 %v1242, %v1360
      %1362 = vmatprep.mubr.f32.mxu0 %v1134
      %1363 = vmatmul.mubr.f32.gmra.mrb[0].mxu0 %v1133
      %v1364 = vpop.f32.mrb[0].mxu0
      %v1365 = vadd.f32 %v1246, %v1364
      %v1366 = vpop.f32.mrb[0].mxu0
      %v1367 = vadd.f32 %v1248, %v1366
      %1368 = vmatprep.mubr.f32.mxu0 %v1138
      %1369 = vmatmul.mubr.f32.gmra.mrb[0].mxu0 %v1137
      %v1370 = vpop.f32.mrb[0].mxu0
      %v1371 = vadd.f32 %v1252, %v1370
      %v1372 = vpop.f32.mrb[0].mxu0
      %v1373 = vadd.f32 %v1254, %v1372
      %1374 = vmatprep.mubr.f32.mxu0 %v1142
      %1375 = vmatmul.mubr.f32.gmra.mrb[0].mxu0 %v1141
      %v1376 = vpop.f32.mrb[0].mxu0
      %v1377 = vadd.f32 %v1258, %v1376
      %v1378 = vpop.f32.mrb[0].mxu0
      %v1379 = vadd.f32 %v1260, %v1378
      %1380 = vdwg.mxu0
      %1381 = vmatprep.subr.mxu0 %v854
      %1382 = vmatpush1.msra.mxu0 %v853
      %1383 = vmatprep.subr.mxu0 %v858
      %1384 = vmatpush1.msra.mxu0 %v857
      %1385 = vmatprep.subr.mxu0 %v862
      %1386 = vmatpush1.msra.mxu0 %v861
      %1387 = vmatprep.subr.mxu0 %v866
      %1388 = vmatpush1.msra.mxu0 %v865
      %1389 = vmatprep.subr.mxu0 %v870
      %1390 = vmatpush1.msra.mxu0 %v869
      %1391 = vmatprep.subr.mxu0 %v874
      %1392 = vmatpush1.msra.mxu0 %v873
      %1393 = vmatprep.subr.mxu0 %v878
      %1394 = vmatpush1.msra.mxu0 %v877
      %1395 = vmatprep.subr.mxu0 %v882
      %1396 = vmatpush1.msra.mxu0 %v881
      %1397 = vmatprep.subr.mxu0 %v886
      %1398 = vmatpush1.msra.mxu0 %v885
      %1399 = vmatprep.subr.mxu0 %v890
      %1400 = vmatpush1.msra.mxu0 %v889
      %1401 = vmatprep.subr.mxu0 %v894
      %1402 = vmatpush1.msra.mxu0 %v893
      %1403 = vmatprep.subr.mxu0 %v898
      %1404 = vmatpush1.msra.mxu0 %v897
      %1405 = vmatprep.subr.mxu0 %v902
      %1406 = vmatpush1.msra.mxu0 %v901
      %1407 = vmatprep.subr.mxu0 %v906
      %1408 = vmatpush1.msra.mxu0 %v905
      %1409 = vmatprep.subr.mxu0 %v910
      %1410 = vmatpush1.msra.mxu0 %v909
      %1411 = vmatprep.subr.mxu0 %v914
      %1412 = vmatpush1.msra.mxu0 %v913
      %1413 = vmatprep.subr.mxu0 %v918
      %1414 = vmatpush1.msra.mxu0 %v917
      %1415 = vmatprep.subr.mxu0 %v922
      %1416 = vmatpush1.msra.mxu0 %v921
      %1417 = vmatprep.subr.mxu0 %v926
      %1418 = vmatpush1.msra.mxu0 %v925
      %1419 = vmatprep.subr.mxu0 %v930
      %1420 = vmatpush1.msra.mxu0 %v929
      %1421 = vmatprep.subr.mxu0 %v934
      %1422 = vmatpush1.msra.mxu0 %v933
      %1423 = vmatprep.subr.mxu0 %v938
      %1424 = vmatpush1.msra.mxu0 %v937
      %1425 = vmatprep.subr.mxu0 %v942
      %1426 = vmatpush1.msra.mxu0 %v941
      %1427 = vmatprep.subr.mxu0 %v946
      %1428 = vmatpush1.msra.mxu0 %v945
      %1429 = vmatprep.subr.mxu0 %v950
      %1430 = vmatpush1.msra.mxu0 %v949
      %1431 = vmatprep.subr.mxu0 %v954
      %1432 = vmatpush1.msra.mxu0 %v953
      %1433 = vmatprep.subr.mxu0 %v958
      %1434 = vmatpush1.msra.mxu0 %v957
      %1435 = vmatprep.subr.mxu0 %v962
      %1436 = vmatpush1.msra.mxu0 %v961
      %1437 = vmatprep.subr.mxu0 %v966
      %1438 = vmatpush1.msra.mxu0 %v965
      %1439 = vmatprep.subr.mxu0 %v970
      %1440 = vmatpush1.msra.mxu0 %v969
      %1441 = vmatprep.subr.mxu0 %v974
      %1442 = vmatpush1.msra.mxu0 %v973
      %1443 = vmatprep.subr.mxu0 %v978
      %1444 = vmatpush1.msra.mxu0 %v977
      %1445 = vmatprep.mubr.f32.mxu0 %v1108
      %1446 = vmatmul.mubr.f32.gmra.mrb[0].mxu0 %v1107
      %v1447 = vpop.f32.mrb[0].mxu0
      %v1448 = vadd.f32 0.0, %v1447
      %v1449 = vpop.f32.mrb[0].mxu0
      %v1450 = vadd.f32 0.0, %v1449
      %1451 = vmatprep.mubr.f32.mxu0 %v1112
      %1452 = vmatmul.mubr.f32.gmra.mrb[0].mxu0 %v1111
      %v1453 = vpop.f32.mrb[0].mxu0
      %v1454 = vadd.f32 0.0, %v1453
      %v1455 = vpop.f32.mrb[0].mxu0
      %v1456 = vadd.f32 0.0, %v1455
      %1457 = vmatprep.mubr.f32.mxu0 %v1116
      %1458 = vmatmul.mubr.f32.gmra.mrb[0].mxu0 %v1115
      %v1459 = vpop.f32.mrb[0].mxu0
      %v1460 = vadd.f32 0.0, %v1459
      %v1461 = vpop.f32.mrb[0].mxu0
      %v1462 = vadd.f32 0.0, %v1461
      %1463 = vmatprep.mubr.f32.mxu0 %v1120
      %1464 = vmatmul.mubr.f32.gmra.mrb[0].mxu0 %v1119
      %v1465 = vpop.f32.mrb[0].mxu0
      %v1466 = vadd.f32 0.0, %v1465
      %v1467 = vpop.f32.mrb[0].mxu0
      %v1468 = vadd.f32 0.0, %v1467
      %1469 = vmatprep.mubr.f32.mxu0 %v1124
      %1470 = vmatmul.mubr.f32.gmra.mrb[0].mxu0 %v1123
      %v1471 = vpop.f32.mrb[0].mxu0
      %v1472 = vadd.f32 0.0, %v1471
      %v1473 = vpop.f32.mrb[0].mxu0
      %v1474 = vadd.f32 0.0, %v1473
      %1475 = vmatprep.mubr.f32.mxu0 %v1128
      %1476 = vmatmul.mubr.f32.gmra.mrb[0].mxu0 %v1127
      %v1477 = vpop.f32.mrb[0].mxu0
      %v1478 = vadd.f32 0.0, %v1477
      %v1479 = vpop.f32.mrb[0].mxu0
      %v1480 = vadd.f32 0.0, %v1479
      %1481 = vmatprep.mubr.f32.mxu0 %v1132
      %1482 = vmatmul.mubr.f32.gmra.mrb[0].mxu0 %v1131
      %v1483 = vpop.f32.mrb[0].mxu0
      %v1484 = vadd.f32 0.0, %v1483
      %v1485 = vpop.f32.mrb[0].mxu0
      %v1486 = vadd.f32 0.0, %v1485
      %1487 = vmatprep.mubr.f32.mxu0 %v1136
      %1488 = vmatmul.mubr.f32.gmra.mrb[0].mxu0 %v1135
      %v1489 = vpop.f32.mrb[0].mxu0
      %v1490 = vadd.f32 0.0, %v1489
      %v1491 = vpop.f32.mrb[0].mxu0
      %v1492 = vadd.f32 0.0, %v1491
      %1493 = vmatprep.mubr.f32.mxu0 %v1140
      %1494 = vmatmul.mubr.f32.gmra.mrb[0].mxu0 %v1139
      %v1495 = vpop.f32.mrb[0].mxu0
      %v1496 = vadd.f32 0.0, %v1495
      %v1497 = vpop.f32.mrb[0].mxu0
      %v1498 = vadd.f32 0.0, %v1497
      %1499 = vdwg.mxu0
      %1500 = vmatprep.subr.mxu0 %v982
      %1501 = vmatpush1.msra.mxu0 %v981
      %1502 = vmatprep.subr.mxu0 %v986
      %1503 = vmatpush1.msra.mxu0 %v985
      %1504 = vmatprep.subr.mxu0 %v990
      %1505 = vmatpush1.msra.mxu0 %v989
      %1506 = vmatprep.subr.mxu0 %v994
      %1507 = vmatpush1.msra.mxu0 %v993
      %1508 = vmatprep.subr.mxu0 %v998
      %1509 = vmatpush1.msra.mxu0 %v997
      %1510 = vmatprep.subr.mxu0 %v1002
      %1511 = vmatpush1.msra.mxu0 %v1001
      %1512 = vmatprep.subr.mxu0 %v1006
      %1513 = vmatpush1.msra.mxu0 %v1005
      %1514 = vmatprep.subr.mxu0 %v1010
      %1515 = vmatpush1.msra.mxu0 %v1009
      %1516 = vmatprep.subr.mxu0 %v1014
      %1517 = vmatpush1.msra.mxu0 %v1013
      %1518 = vmatprep.subr.mxu0 %v1018
      %1519 = vmatpush1.msra.mxu0 %v1017
      %1520 = vmatprep.subr.mxu0 %v1022
      %1521 = vmatpush1.msra.mxu0 %v1021
      %1522 = vmatprep.subr.mxu0 %v1026
      %1523 = vmatpush1.msra.mxu0 %v1025
      %1524 = vmatprep.subr.mxu0 %v1030
      %1525 = vmatpush1.msra.mxu0 %v1029
      %1526 = vmatprep.subr.mxu0 %v1034
      %1527 = vmatpush1.msra.mxu0 %v1033
      %1528 = vmatprep.subr.mxu0 %v1038
      %1529 = vmatpush1.msra.mxu0 %v1037
      %1530 = vmatprep.subr.mxu0 %v1042
      %1531 = vmatpush1.msra.mxu0 %v1041
      %1532 = vmatprep.subr.mxu0 %v1046
      %1533 = vmatpush1.msra.mxu0 %v1045
      %1534 = vmatprep.subr.mxu0 %v1050
      %1535 = vmatpush1.msra.mxu0 %v1049
      %1536 = vmatprep.subr.mxu0 %v1054
      %1537 = vmatpush1.msra.mxu0 %v1053
      %1538 = vmatprep.subr.mxu0 %v1058
      %1539 = vmatpush1.msra.mxu0 %v1057
      %1540 = vmatprep.subr.mxu0 %v1062
      %1541 = vmatpush1.msra.mxu0 %v1061
      %1542 = vmatprep.subr.mxu0 %v1066
      %1543 = vmatpush1.msra.mxu0 %v1065
      %1544 = vmatprep.subr.mxu0 %v1070
      %1545 = vmatpush1.msra.mxu0 %v1069
      %1546 = vmatprep.subr.mxu0 %v1074
      %1547 = vmatpush1.msra.mxu0 %v1073
      %1548 = vmatprep.subr.mxu0 %v1078
      %1549 = vmatpush1.msra.mxu0 %v1077
      %1550 = vmatprep.subr.mxu0 %v1082
      %1551 = vmatpush1.msra.mxu0 %v1081
      %1552 = vmatprep.subr.mxu0 %v1086
      %1553 = vmatpush1.msra.mxu0 %v1085
      %1554 = vmatprep.subr.mxu0 %v1090
      %1555 = vmatpush1.msra.mxu0 %v1089
      %1556 = vmatprep.subr.mxu0 %v1094
      %1557 = vmatpush1.msra.mxu0 %v1093
      %1558 = vmatprep.subr.mxu0 %v1098
      %1559 = vmatpush1.msra.mxu0 %v1097
      %1560 = vmatprep.subr.mxu0 %v1102
      %1561 = vmatpush1.msra.mxu0 %v1101
      %1562 = vmatprep.subr.mxu0 %v1106
      %1563 = vmatpush1.msra.mxu0 %v1105
      %1564 = vmatprep.mubr.f32.mxu0 %v1110
      %1565 = vmatmul.mubr.f32.gmra.mrb[0].mxu0 %v1109
      %v1566 = vpop.f32.mrb[0].mxu0
      %v1567 = vadd.f32 %v1448, %v1566
      %v1568 = vpop.f32.mrb[0].mxu0
      %v1569 = vadd.f32 %v1450, %v1568
      %1570 = vmatprep.mubr.f32.mxu0 %v1114
      %1571 = vmatmul.mubr.f32.gmra.mrb[0].mxu0 %v1113
      %v1572 = vpop.f32.mrb[0].mxu0
      %v1573 = vadd.f32 %v1454, %v1572
      %v1574 = vpop.f32.mrb[0].mxu0
      %v1575 = vadd.f32 %v1456, %v1574
      %1576 = vmatprep.mubr.f32.mxu0 %v1118
      %1577 = vmatmul.mubr.f32.gmra.mrb[0].mxu0 %v1117
      %v1578 = vpop.f32.mrb[0].mxu0
      %v1579 = vadd.f32 %v1460, %v1578
      %v1580 = vpop.f32.mrb[0].mxu0
      %v1581 = vadd.f32 %v1462, %v1580
      %1582 = vmatprep.mubr.f32.mxu0 %v1122
      %1583 = vmatmul.mubr.f32.gmra.mrb[0].mxu0 %v1121
      %v1584 = vpop.f32.mrb[0].mxu0
      %v1585 = vadd.f32 %v1466, %v1584
      %v1586 = vpop.f32.mrb[0].mxu0
      %v1587 = vadd.f32 %v1468, %v1586
      %1588 = vmatprep.mubr.f32.mxu0 %v1126
      %1589 = vmatmul.mubr.f32.gmra.mrb[0].mxu0 %v1125
      %v1590 = vpop.f32.mrb[0].mxu0
      %v1591 = vadd.f32 %v1472, %v1590
      %v1592 = vpop.f32.mrb[0].mxu0
      %v1593 = vadd.f32 %v1474, %v1592
      %1594 = vmatprep.mubr.f32.mxu0 %v1130
      %1595 = vmatmul.mubr.f32.gmra.mrb[0].mxu0 %v1129
      %v1596 = vpop.f32.mrb[0].mxu0
      %v1597 = vadd.f32 %v1478, %v1596
      %v1598 = vpop.f32.mrb[0].mxu0
      %v1599 = vadd.f32 %v1480, %v1598
      %1600 = vmatprep.mubr.f32.mxu0 %v1134
      %1601 = vmatmul.mubr.f32.gmra.mrb[0].mxu0 %v1133
      %v1602 = vpop.f32.mrb[0].mxu0
      %v1603 = vadd.f32 %v1484, %v1602
      %v1604 = vpop.f32.mrb[0].mxu0
      %v1605 = vadd.f32 %v1486, %v1604
      %1606 = vmatprep.mubr.f32.mxu0 %v1138
      %1607 = vmatmul.mubr.f32.gmra.mrb[0].mxu0 %v1137
      %v1608 = vpop.f32.mrb[0].mxu0
      %v1609 = vadd.f32 %v1490, %v1608
      %v1610 = vpop.f32.mrb[0].mxu0
      %v1611 = vadd.f32 %v1492, %v1610
      %1612 = vmatprep.mubr.f32.mxu0 %v1142
      %1613 = vmatmul.mubr.f32.gmra.mrb[0].mxu0 %v1141
      %v1614 = vpop.f32.mrb[0].mxu0
      %v1615 = vadd.f32 %v1496, %v1614
      %v1616 = vpop.f32.mrb[0].mxu0
      %v1617 = vadd.f32 %v1498, %v1616
      %1618 = vdwg.mxu0
      %v1619 = vlaneseq
      %v1620 = vand.u32 %v1619, 127
      %v1621 = vadd.s32 %v1620, 128
      %v1622 = vadd.s32 %v1620, 256
      %v1623 = vadd.s32 %v1620, 384
      %s1624 = smul.u32 %s21, 512
      %v1625 = vstv %s1624
      %v1626 = vadd.s32 %v1625, %v1620
      %v1627 = vadd.s32 %v1625, %v1621
      %v1628 = vadd.s32 %v1625, %v1622
      %v1629 = vadd.s32 %v1625, %v1623
      %vm1630 = vcmp.lt.s32.totalorder %v1626, 512
      %vm1631 = vcmp.lt.s32.totalorder %v1627, 512
      %vm1632 = vcmp.lt.s32.totalorder %v1628, 512
      %vm1633 = vcmp.lt.s32.totalorder %v1629, 512
      %v1634 = vsel %vm1630, %v1329, 0.0
      %v1635 = vsel %vm1631, %v1331, 0.0
      %v1636 = vsel %vm1632, %v1567, 0.0
      %v1637 = vsel %vm1633, %v1569, 0.0
      %vm1638 = vcmask 1040384
      %v1639 = vsel %vm1638, %v1634, 0.0
      %v1640 = vsel %vm1638, %v1635, 0.0
      %v1641 = vadd.f32 %v1639, %v1640
      %v1642 = vsel %vm1638, %v1636, 0.0
      %v1643 = vadd.f32 %v1641, %v1642
      %v1644 = vsel %vm1638, %v1637, 0.0
      %v1645 = vadd.f32 %v1643, %v1644
      %1646 = vadd.xlane.f32.xlu0 %v1645
      %v1647 = vpop.xlane.xlu0 %1646
      %v1648 = vrot.slane %v1647, 4
      %v1649 = vadd.f32 %v1647, %v1648
      %v1650 = vrot.slane %v1649, 2
      %v1651 = vadd.f32 %v1649, %v1650
      %v1652 = vrot.slane %v1651, 1
      %v1653 = vadd.f32 %v1651, %v1652
      %s1654 = vtos %v1653
      %vm1655 = vcmp.eq.s32.totalorder %v1620, 0
      %v1656 = vstv %s1654
      %v1657 = vsel %vm1655, %v1656, 0.0
      %1658 = vst [vmem:[%s238] sm:$0x1] %v1657
      %v1659 = vmul.f32 %v1329, 256.0
      %v1660 = vmul.f32 %v1331, 256.0
      %v1661 = vmul.f32 %v1567, 256.0
      %v1662 = vmul.f32 %v1569, 256.0
      %v1667 = vrot.slane %v1329, 1
      %v1668 = vrot.slane %v1331, 1
      %v1669 = vrot.slane %v1567, 1
      %v1670 = vrot.slane %v1569, 1
      %v1675 = vadd.f32 %v1659, %v1667
      %v1676 = vadd.f32 %v1660, %v1668
      %v1677 = vadd.f32 %v1661, %v1669
      %v1678 = vadd.f32 %v1662, %v1670
      %v1679 = vadd.f32 %v1675, 0.5
      %v1680 = vadd.f32 %v1676, 0.5
      %v1681 = vadd.f32 %v1677, 0.5
      %v1682 = vadd.f32 %v1678, 0.5
      %v1683 = vcvt.f32.s32.to.zero.pseudo %v1679
      %v1684 = vcvt.f32.s32.to.zero.pseudo %v1680
      %v1685 = vcvt.f32.s32.to.zero.pseudo %v1681
      %v1686 = vcvt.f32.s32.to.zero.pseudo %v1682
      %v1687 = vcombine.low %v1683, %v1684
      %v1688 = vcombine.low %v1685, %v1686
      %v1690 = vunpack.c.l.s4 1966171168
      %v1691 = vunpack.c.0.s8 %v1690
      %v1692 = vlaneseq
      %v1693 = vshrl.u32 %v1692, 7
      %v1694 = vsub.s32 %v1691, %v1693
      %v1695 = vrot.slane %v1687, %v1694
      %v1697 = vunpack.c.l.s4 1966171168
      %v1698 = vunpack.c.0.s8 %v1697
      %v1699 = vlaneseq
      %v1700 = vshrl.u32 %v1699, 7
      %v1701 = vsub.s32 %v1698, %v1700
      %v1702 = vrot.slane %v1688, %v1701
      %v1703 = vcombine.high %v1695, %v1702
      %v1705 = vunpack.c.l.s4 1966171168
      %v1706 = vunpack.c.0.s8 %v1705
      %v1707 = vlaneseq
      %v1708 = vshrl.u32 %v1707, 7
      %v1709 = vsub.s32 %v1706, %v1708
      %v1710 = vrot.slane %v1703, %v1709
      %v1711 = vlaneseq
      %vm1712 = vcmp.ge.s32.totalorder %v1711, 0
      %vm1713 = vcmp.lt.s32.totalorder %v1711, 512
      %vm1714 = vmand %vm1712, %vm1713
      %1715 = vst.msk [vmem:[%s244] sm:$0xf] %vm1714, %v1710
      %1716 = vst [vmem:[%s255] sm:$0xff] %v1335
      %1717 = vst [vmem:[%s255 + $0x8] sm:$0xff] %v1337
      %1718 = vst [vmem:[%s255 + $0x10] sm:$0xff] %v1573
      %1719 = vst [vmem:[%s255 + $0x18] sm:$0xff] %v1575
      %1720 = vst [vmem:[%s255 + $0x20] sm:$0xff] %v1341
      %1721 = vst [vmem:[%s255 + $0x28] sm:$0xff] %v1343
      %1722 = vst [vmem:[%s255 + $0x30] sm:$0xff] %v1579
      %1723 = vst [vmem:[%s255 + $0x38] sm:$0xff] %v1581
      %1724 = vst [vmem:[%s255 + $0x40] sm:$0xff] %v1347
      %1725 = vst [vmem:[%s255 + $0x48] sm:$0xff] %v1349
      %1726 = vst [vmem:[%s255 + $0x50] sm:$0xff] %v1585
      %1727 = vst [vmem:[%s255 + $0x58] sm:$0xff] %v1587
      %1728 = vst [vmem:[%s255 + $0x60] sm:$0xff] %v1353
      %1729 = vst [vmem:[%s255 + $0x68] sm:$0xff] %v1355
      %1730 = vst [vmem:[%s255 + $0x70] sm:$0xff] %v1591
      %1731 = vst [vmem:[%s255 + $0x78] sm:$0xff] %v1593
      %1732 = vst [vmem:[%s255 + $0x80] sm:$0xff] %v1359
      %1733 = vst [vmem:[%s255 + $0x88] sm:$0xff] %v1361
      %1734 = vst [vmem:[%s255 + $0x90] sm:$0xff] %v1597
      %1735 = vst [vmem:[%s255 + $0x98] sm:$0xff] %v1599
      %1736 = vst [vmem:[%s255 + $0xa0] sm:$0xff] %v1365
      %1737 = vst [vmem:[%s255 + $0xa8] sm:$0xff] %v1367
      %1738 = vst [vmem:[%s255 + $0xb0] sm:$0xff] %v1603
      %1739 = vst [vmem:[%s255 + $0xb8] sm:$0xff] %v1605
      %1740 = vst [vmem:[%s255 + $0xc0] sm:$0xff] %v1371
      %1741 = vst [vmem:[%s255 + $0xc8] sm:$0xff] %v1373
      %1742 = vst [vmem:[%s255 + $0xd0] sm:$0xff] %v1609
      %1743 = vst [vmem:[%s255 + $0xd8] sm:$0xff] %v1611
      %1744 = vst [vmem:[%s255 + $0xe0] sm:$0xff] %v1377
      %1745 = vst [vmem:[%s255 + $0xe8] sm:$0xff] %v1379
      %1746 = vst [vmem:[%s255 + $0xf0] sm:$0xff] %v1615
      %1747 = vst [vmem:[%s255 + $0xf8] sm:$0xff] %v1617
      %s1748 = sadd.s32 %s20, %s21
      %p1749 = scmp.lt.s32.totalorder %s1748, 1
      %s1750 = scalar_select %p1749, %s1748, 1
      %s1751 = scalar_lea.vmem %s2, %s1750
      %s1752 = sadd.s32 %s20, %s21
      %s1753 = smul.u32 4, %s1752
      %p1754 = scmp.lt.s32.totalorder %s1753, 7
      %s1755 = scalar_select %p1754, %s1753, 7
      %s1756 = scalar_lea.vmem %s3, %s1755
      %s1757 = smul.u32 4, %s21
      %p1758 = scmp.lt.s32.totalorder %s20, 1
      %s1759 = scalar_select %p1758, %s20, 1
      %p1760 = scmp.lt.s32.totalorder %s1757, 3
      %s1761 = scalar_select %p1760, %s1757, 3
      %s1762 = smul.addr %s1759, 32
      %s1763 = sadd.s32 %s1761, %s1762
      %s1764 = smul.addr %s1763, 8
      %s1765 = scalar_lea.vmem %s4, %s1764
      // Predicated region
      $region29: #{carla_gen3dvq_train_forward.1} parent=27 // pred_check
        %p1766 = pneg %p97
      $region30: #{carla_gen3dvq_train_forward.1} parent=27 // pred_check_branch
        %1768 = sbr.rel (%p1766) target = $region32
      $region31: #{carla_gen3dvq_train_forward.1} parent=27 // pred_region
        %s1769 = sadd.s32 %s20, %s21
      $region32: #{carla_gen3dvq_train_forward.1} parent=27 // pred_fallthru
        _
      // Predicated region
      $region33: #{carla_gen3dvq_train_forward.1} parent=27 // pred_check
        %p1770 = pneg %p125
      $region34: #{carla_gen3dvq_train_forward.1} parent=27 // pred_check_branch
        %1772 = sbr.rel (%p1770) target = $region36
      $region35: #{carla_gen3dvq_train_forward.1} parent=27 // pred_region
        %s1773 = sadd.s32 %s20, %s21
        %s1774 = smul.u32 4, %s1773
      $region36: #{carla_gen3dvq_train_forward.1} parent=27 // pred_fallthru
        _
      // Predicated region
      $region37: #{carla_gen3dvq_train_forward.1} parent=27 // pred_check
        %p1775 = pneg %p153
      $region38: #{carla_gen3dvq_train_forward.1} parent=27 // pred_check_branch
        %1777 = sbr.rel (%p1775) target = $region40
      $region39: #{carla_gen3dvq_train_forward.1} parent=27 // pred_region
        %s1778 = smul.u32 4, %s21
      $region40: #{carla_gen3dvq_train_forward.1} parent=27 // pred_fallthru
        _
    $region28: #{carla_gen3dvq_train_forward.1} parent=5 // pred_fallthru
      _
    %p1779 = scmp.le.s32.totalorder 2, %s11
    // Predicated region
    $region41: #{carla_gen3dvq_train_forward.1} parent=5 // pred_check
      %p1780 = pneg %p1779
    $region42: #{carla_gen3dvq_train_forward.1} parent=5 // pred_check_branch
      %1782 = sbr.rel (%p1780) target = $region44
    $region43: #{carla_gen3dvq_train_forward.1} parent=5 // pred_region
      %s1783 = ssub.s32 %s11, 2
      // Predicated region
      $region45: #{carla_gen3dvq_train_forward.1} parent=43 // pred_check
        %p1784 = pneg %p103
      $region46: #{carla_gen3dvq_train_forward.1} parent=43 // pred_check_branch
        %1786 = sbr.rel (%p1784) target = $region48
      $region47: #{carla_gen3dvq_train_forward.1} parent=43 // pred_region
        %s1787 = sadd.s32 %s22, %s23
        %p1788 = scmp.lt.s32.totalorder %s1787, 1
        %s1789 = scalar_select %p1788, %s1787, 1
        %s1790 = scalar_lea.vmem %s2, %s1789
      $region48: #{carla_gen3dvq_train_forward.1} parent=43 // pred_fallthru
        _
      // Predicated region
      $region49: #{carla_gen3dvq_train_forward.1} parent=43 // pred_check
        %p1791 = pneg %p131
      $region50: #{carla_gen3dvq_train_forward.1} parent=43 // pred_check_branch
        %1793 = sbr.rel (%p1791) target = $region52
      $region51: #{carla_gen3dvq_train_forward.1} parent=43 // pred_region
        %s1794 = sadd.s32 %s22, %s23
        %s1795 = smul.u32 4, %s1794
        %p1796 = scmp.lt.s32.totalorder %s1795, 7
        %s1797 = scalar_select %p1796, %s1795, 7
        %s1798 = scalar_lea.vmem %s3, %s1797
      $region52: #{carla_gen3dvq_train_forward.1} parent=43 // pred_fallthru
        _
      // Predicated region
      $region53: #{carla_gen3dvq_train_forward.1} parent=43 // pred_check
        %p1799 = pneg %p159
      $region54: #{carla_gen3dvq_train_forward.1} parent=43 // pred_check_branch
        %1801 = sbr.rel (%p1799) target = $region56
      $region55: #{carla_gen3dvq_train_forward.1} parent=43 // pred_region
        %s1802 = smul.u32 4, %s23
        %p1803 = scmp.lt.s32.totalorder %s22, 1
        %s1804 = scalar_select %p1803, %s22, 1
        %p1805 = scmp.lt.s32.totalorder %s1802, 3
        %s1806 = scalar_select %p1805, %s1802, 3
        %s1807 = smul.addr %s1804, 32
        %s1808 = sadd.s32 %s1806, %s1807
        %s1809 = smul.addr %s1808, 8
        %s1810 = scalar_lea.vmem %s4, %s1809
      $region56: #{carla_gen3dvq_train_forward.1} parent=43 // pred_fallthru
        _
    $region44: #{carla_gen3dvq_train_forward.1} parent=5 // pred_fallthru
      _
  $region6: #{carla_gen3dvq_train_forward.1} parent=0 // loop_footer
    %s15 = sadd.s32 1, %s11
  $region7: #{carla_gen3dvq_train_forward.1} parent=0 // loop_footer_branch
    %10 = sbr.rel target = $region3
  $region8: #{carla_gen3dvq_train_forward.1} parent=0 // loop_exit
    _

</llo_original>
